<compile_context>
chip_gen: v7x
topology: tpu7x:2x2x1
jax: 0.10.0
libtpu: 0.0.40
codegen_flags: <defaults>
</compile_context>

<pallas_src>
import functools

import jax
import jax.numpy as jnp
from jax.experimental import pallas as pl
from jax.experimental.pallas import tpu as pltpu


def _actor_kernel(obs_ref,
                  w1_ref, b1_ref,
                  w2_ref, b2_ref,
                  wh_ref, bh_ref,
                  out_ref,
                  *, log_std_min, log_std_max, action_dims):
    """One batch tile per grid step; all weights stay VMEM-resident."""
    compute_dtype = w1_ref.dtype           # f32 or bf16 matmul operands
    obs = obs_ref[...]
    if obs.dtype != compute_dtype:         # cast only if producer dtype differs
        obs = obs.astype(compute_dtype)

    # fc1 + relu  (MXU, f32 accumulation; bias/epilogue math in f32)
    h1 = jnp.dot(obs, w1_ref[...], preferred_element_type=jnp.float32) + b1_ref[...]
    h1 = jnp.maximum(h1, 0.0)

    # fc2 + relu
    h2 = jnp.dot(h1.astype(compute_dtype), w2_ref[...],
                 preferred_element_type=jnp.float32) + b2_ref[...]
    h2 = jnp.maximum(h2, 0.0)

    # Fused, lane-dense heads: cols [0, A) = mean, [A, 2A) = log_std,
    # [2A, out_pad) = zero padding (discarded by the wrapper slice).
    heads = jnp.dot(h2.astype(compute_dtype), wh_ref[...],
                    preferred_element_type=jnp.float32) + bh_ref[...]

    # Lane-select epilogue (iota/mask hoisted, computed once). clip bounds every
    # lane before exp, so no overflow even on mean/padding lanes; EUP work on
    # dead lanes is unavoidable within one 128-lane vreg and is hidden under DMA.
    lane = jax.lax.broadcasted_iota(jnp.int32, heads.shape, dimension=1)
    std = jnp.exp(jnp.clip(heads, log_std_min, log_std_max))      # EUP slot
    out_ref[...] = jnp.where(lane >= action_dims, std, heads).astype(out_ref.dtype)


def tanh_gaussian_actor_forward(obs, params, log_std_min, log_std_max,
                                *, block_b=4096, compute_dtype=jnp.float32,
                                out_dtype=jnp.float32, vmem_budget_bytes=None):
    """Actor MLP as a single Pallas kernel, gridded over the batch dimension."""
    B, input_dims = obs.shape
    hidden = params["w1"].shape[1]
    action_dims = params["wm"].shape[1]
    out_w = 2 * action_dims
    out_w_pad = int(pl.cdiv(out_w, 128) * 128)         # lane-dense output slab

    # --- head fusion + lane padding (outside the kernel) ----------------------
    wh = jnp.concatenate([params["wm"], params["ws"]], axis=1)      # [H, 2A]
    bh = jnp.concatenate([params["bm"], params["bs"]], axis=1)      # [1, 2A]
    if out_w_pad != out_w:
        wh = jnp.pad(wh, ((0, 0), (0, out_w_pad - out_w)))
        bh = jnp.pad(bh, ((0, 0), (0, out_w_pad - out_w)))

    w1 = params["w1"].astype(compute_dtype)
    w2 = params["w2"].astype(compute_dtype)
    wh = wh.astype(compute_dtype)
    b1, b2 = params["b1"], params["b2"]     # biases / epilogue math stay f32

    weights = (w1, b1, w2, b2, wh, bh)
    weight_bytes = sum(int(a.size) * a.dtype.itemsize for a in weights)

    # --- per-generation VMEM budget & batch tile ------------------------------
    if vmem_budget_bytes is None:
        try:
            phys = int(pltpu.get_tpu_info().vmem_capacity_bytes)   # 128 MiB v5e/v6e, 64 MiB v7x
        except Exception:
            phys = 64 << 20                                        # v7x-safe fallback
        vmem_budget_bytes = (phys * 3) // 4                        # headroom for compiler scratch

    out_isz = jnp.dtype(out_dtype).itemsize
    per_row = (2 * input_dims * obs.dtype.itemsize   # obs stream (double-buffered)
               + 2 * out_w_pad * out_isz             # out slab   (double-buffered)
               + 2 * hidden * 4                      # h1, h2 intermediates (f32)
               + out_w_pad * 4)                      # heads (f32)
    # 2*weight_bytes is conservative (covers the double-buffered fallback).
    tb_cap = max(8, ((vmem_budget_bytes - 2 * weight_bytes) // per_row) // 8 * 8)

    tb = min(block_b, B, tb_cap)
    if tb < B:
        tb = max(8, (tb // 8) * 8)                   # sublane-aligned tile
    grid = (int(pl.cdiv(B, tb)),)                    # partial last block is fine:
                                                     # rows are independent, tail
                                                     # is sliced away below.
    vmem_limit = int(max(2 * weight_bytes + per_row * tb + (2 << 20), 32 << 20))

    kernel = functools.partial(
        _actor_kernel,
        log_std_min=float(log_std_min),
        log_std_max=float(log_std_max),
        action_dims=action_dims,
    )

    flops = 2 * B * (input_dims * hidden + hidden * hidden + hidden * out_w_pad)
    bytes_accessed = (obs.size * obs.dtype.itemsize + weight_bytes
                      + B * out_w_pad * out_isz)
    cost = pl.CostEstimate(flops=flops,
                           transcendentals=B * out_w_pad,
                           bytes_accessed=bytes_accessed)

    def _build(weight_pipeline_mode):
        # Weights/biases: same block every grid step -> resident in VMEM.
        def resident(a):
            if weight_pipeline_mode is None:
                return pl.BlockSpec(a.shape, lambda i: (0,) * a.ndim)
            return pl.BlockSpec(a.shape, lambda i: (0,) * a.ndim,
                                pipeline_mode=weight_pipeline_mode)

        return pl.pallas_call(
            kernel,
            out_shape=jax.ShapeDtypeStruct((B, out_w_pad), out_dtype),
            grid=grid,
            in_specs=[
                pl.BlockSpec((tb, input_dims), lambda i: (i, 0)),   # obs tile
                resident(w1), resident(b1),
                resident(w2), resident(b2),
                resident(wh), resident(bh),
            ],
            out_specs=pl.BlockSpec((tb, out_w_pad), lambda i: (i, 0)),  # [mean|std|pad]
            compiler_params=pltpu.CompilerParams(
                dimension_semantics=("parallel",),     # batch axis -> 2 TCs on v7x
                vmem_limit_bytes=vmem_limit),
            cost_estimate=cost,
        )

    # TODO(synk): verify on v7x (xprof) that "parallel" actually shards the batch
    # grid across both TensorCores; if not, switch to pltpu.CORE_PARALLEL /
    # pl.core_map over create_tensorcore_mesh.
    try:
        # Single-buffer the constant-index weight streams (nothing to prefetch).
        out = _build(pl.Buffered(1))(obs, w1, b1, w2, b2, wh, bh)
    except Exception:
        # Fallback: default double-buffered weights (still correct, more VMEM).
        out = _build(None)(obs, w1, b1, w2, b2, wh, bh)

    mean = out[:, :action_dims]
    std = out[:, action_dims:out_w]
    return mean, std


def init_params(key, input_dims, action_dims, hidden_size):
    """Deterministic synthetic init (PyTorch nn.Linear-style uniform bounds)."""
    ks = jax.random.split(key, 8)

    def linear(kw, kb, fan_in, fan_out):
        bound = 1.0 / jnp.sqrt(fan_in)
        w = jax.random.uniform(kw, (fan_in, fan_out), jnp.float32, -bound, bound)
        b = jax.random.uniform(kb, (1, fan_out), jnp.float32, -bound, bound)
        return w, b

    w1, b1 = linear(ks[0], ks[1], input_dims, hidden_size)
    w2, b2 = linear(ks[2], ks[3], hidden_size, hidden_size)
    wm, bm = linear(ks[4], ks[5], hidden_size, action_dims)
    ws, bs = linear(ks[6], ks[7], hidden_size, action_dims)
    return dict(w1=w1, b1=b1, w2=w2, b2=b2, wm=wm, bm=bm, ws=ws, bs=bs)


def reference_forward(obs, p, log_std_min, log_std_max):
    x = jnp.maximum(obs @ p["w1"] + p["b1"], 0.0)
    x = jnp.maximum(x @ p["w2"] + p["b2"], 0.0)
    mean = x @ p["wm"] + p["bm"]
    log_std = jnp.clip(x @ p["ws"] + p["bs"], log_std_min, log_std_max)
    return mean, jnp.exp(log_std)


if __name__ == "__main__":
    key = jax.random.PRNGKey(0)
    k_obs, k_params = jax.random.split(key)

    # Small shapes consistent with the module; B deliberately not a multiple of
    # 8 so the small-tile call exercises the partial-last-block path (no padded
    # obs copy anymore).
    B, input_dims, hidden_size, action_dims = 20, 16, 32, 8
    log_std_min, log_std_max = -20.0, 2.0

    obs = jax.random.normal(k_obs, (B, input_dims), jnp.float32)
    params = init_params(k_params, input_dims, action_dims, hidden_size)

    mean_ref, std_ref = reference_forward(obs, params, log_std_min, log_std_max)

    # f32 path, small tile -> grid of 3 with a masked partial last batch block.
    mean, std = tanh_gaussian_actor_forward(obs, params, log_std_min, log_std_max,
                                            block_b=8)
    jax.block_until_ready((mean, std))
    assert mean.shape == (B, action_dims) and std.shape == (B, action_dims)
    assert jnp.allclose(mean, mean_ref, atol=1e-5, rtol=1e-5)
    assert jnp.allclose(std, std_ref, atol=1e-5, rtol=1e-5)

    # f32 path, default (large) tile -> single grid step at this toy batch.
    mean2, std2 = tanh_gaussian_actor_forward(obs, params, log_std_min, log_std_max)
    jax.block_until_ready((mean2, std2))
    assert jnp.allclose(mean2, mean_ref, atol=1e-5, rtol=1e-5)
    assert jnp.allclose(std2, std_ref, atol=1e-5, rtol=1e-5)

    # bf16-at-the-source path (halves the dominant obs HBM read); f32
    # accumulation / epilogue, loose tolerance.
    mean_bf, std_bf = tanh_gaussian_actor_forward(
        obs.astype(jnp.bfloat16), params, log_std_min, log_std_max,
        block_b=8, compute_dtype=jnp.bfloat16)
    jax.block_until_ready((mean_bf, std_bf))
    assert jnp.allclose(mean_bf, mean_ref, atol=2e-1, rtol=2e-1)
    assert jnp.allclose(std_bf, std_ref, atol=2e-1, rtol=2e-1)

    print("KERNEL_OK")
</pallas_src>

<mosaic_0001>
module attributes {stable_mosaic.version = 11 : i64} {
  func.func @_actor_kernel(%arg0: i32, %arg1: memref<8x16xf32, #tpu.memory_space<vmem>>, %arg2: memref<16x32xf32, #tpu.memory_space<vmem>>, %arg3: memref<1x32xf32, #tpu.memory_space<vmem>>, %arg4: memref<32x32xf32, #tpu.memory_space<vmem>>, %arg5: memref<1x32xf32, #tpu.memory_space<vmem>>, %arg6: memref<32x128xf32, #tpu.memory_space<vmem>>, %arg7: memref<1x128xf32, #tpu.memory_space<vmem>>, %arg8: memref<8x128xf32, #tpu.memory_space<vmem>>) attributes {dimension_semantics = [#tpu.dimension_semantics<parallel>], iteration_bounds = array<i64: 3>, scalar_prefetch = 0 : i64, scratch_operands = 0 : i64, tpu.core_type = #tpu.core_type<tc>, window_params = [{transform_indices = @transform_0, window_bounds = array<i64: 8, 16>}, {pipeline_mode = #tpu.pipeline_mode<synchronous>, transform_indices = @transform_1, window_bounds = array<i64: 16, 32>}, {pipeline_mode = #tpu.pipeline_mode<synchronous>, transform_indices = @transform_2, window_bounds = array<i64: 1, 32>}, {pipeline_mode = #tpu.pipeline_mode<synchronous>, transform_indices = @transform_3, window_bounds = array<i64: 32, 32>}, {pipeline_mode = #tpu.pipeline_mode<synchronous>, transform_indices = @transform_4, window_bounds = array<i64: 1, 32>}, {pipeline_mode = #tpu.pipeline_mode<synchronous>, transform_indices = @transform_5, window_bounds = array<i64: 32, 128>}, {pipeline_mode = #tpu.pipeline_mode<synchronous>, transform_indices = @transform_6, window_bounds = array<i64: 1, 128>}, {transform_indices = @transform_7, window_bounds = array<i64: 8, 128>}]} {
    %c0 = arith.constant 0 : index
    %c0_0 = arith.constant 0 : index
    %0 = vector.load %arg1[%c0, %c0_0] : memref<8x16xf32, #tpu.memory_space<vmem>>, vector<8x16xf32>
    %c0_1 = arith.constant 0 : index
    %c0_2 = arith.constant 0 : index
    %1 = vector.load %arg2[%c0_1, %c0_2] : memref<16x32xf32, #tpu.memory_space<vmem>>, vector<16x32xf32>
    %cst = arith.constant dense<0.000000e+00> : vector<8x32xf32>
    %2 = tpu.matmul %0, %1, %cst {dimension_numbers = #tpu.dot_dimension_numbers<[1], [0], [0], [1], [0, 0, 1, 1], [], []>} : vector<8x16xf32>, vector<16x32xf32>, vector<8x32xf32> -> vector<8x32xf32>
    %c0_3 = arith.constant 0 : index
    %c0_4 = arith.constant 0 : index
    %3 = vector.load %arg3[%c0_3, %c0_4] : memref<1x32xf32, #tpu.memory_space<vmem>>, vector<1x32xf32>
    %4 = vector.broadcast %3 : vector<1x32xf32> to vector<8x32xf32>
    %5 = arith.addf %2, %4 : vector<8x32xf32>
    %cst_5 = arith.constant 0.000000e+00 : f32
    %6 = vector.broadcast %cst_5 : f32 to vector<8x32xf32>
    %7 = arith.maximumf %5, %6 : vector<8x32xf32>
    %c0_6 = arith.constant 0 : index
    %c0_7 = arith.constant 0 : index
    %8 = vector.load %arg4[%c0_6, %c0_7] : memref<32x32xf32, #tpu.memory_space<vmem>>, vector<32x32xf32>
    %cst_8 = arith.constant dense<0.000000e+00> : vector<8x32xf32>
    %9 = tpu.matmul %7, %8, %cst_8 {dimension_numbers = #tpu.dot_dimension_numbers<[1], [0], [0], [1], [0, 0, 1, 1], [], []>} : vector<8x32xf32>, vector<32x32xf32>, vector<8x32xf32> -> vector<8x32xf32>
    %c0_9 = arith.constant 0 : index
    %c0_10 = arith.constant 0 : index
    %10 = vector.load %arg5[%c0_9, %c0_10] : memref<1x32xf32, #tpu.memory_space<vmem>>, vector<1x32xf32>
    %11 = vector.broadcast %10 : vector<1x32xf32> to vector<8x32xf32>
    %12 = arith.addf %9, %11 : vector<8x32xf32>
    %cst_11 = arith.constant 0.000000e+00 : f32
    %13 = vector.broadcast %cst_11 : f32 to vector<8x32xf32>
    %14 = arith.maximumf %12, %13 : vector<8x32xf32>
    %c0_12 = arith.constant 0 : index
    %c0_13 = arith.constant 0 : index
    %15 = vector.load %arg6[%c0_12, %c0_13] : memref<32x128xf32, #tpu.memory_space<vmem>>, vector<32x128xf32>
    %cst_14 = arith.constant dense<0.000000e+00> : vector<8x128xf32>
    %16 = tpu.matmul %14, %15, %cst_14 {dimension_numbers = #tpu.dot_dimension_numbers<[1], [0], [0], [1], [0, 0, 1, 1], [], []>} : vector<8x32xf32>, vector<32x128xf32>, vector<8x128xf32> -> vector<8x128xf32>
    %c0_15 = arith.constant 0 : index
    %c0_16 = arith.constant 0 : index
    %17 = vector.load %arg7[%c0_15, %c0_16] : memref<1x128xf32, #tpu.memory_space<vmem>>, vector<1x128xf32>
    %18 = vector.broadcast %17 : vector<1x128xf32> to vector<8x128xf32>
    %19 = arith.addf %16, %18 : vector<8x128xf32>
    %20 = tpu.iota {dimensions = array<i32: 1>} : vector<8x128xi32>
    %cst_17 = arith.constant -2.000000e+01 : f32
    %cst_18 = arith.constant 2.000000e+00 : f32
    %21 = vector.broadcast %cst_17 : f32 to vector<8x128xf32>
    %22 = arith.maximumf %21, %19 : vector<8x128xf32>
    %23 = vector.broadcast %cst_18 : f32 to vector<8x128xf32>
    %24 = arith.minimumf %23, %22 : vector<8x128xf32>
    %25 = math.exp %24 : vector<8x128xf32>
    %c8_i32 = arith.constant 8 : i32
    %26 = vector.broadcast %c8_i32 : i32 to vector<8x128xi32>
    %27 = arith.cmpi sge, %20, %26 : vector<8x128xi32>
    %28 = arith.select %27, %25, %19 : vector<8x128xi1>, vector<8x128xf32>
    %c0_19 = arith.constant 0 : index
    %c0_20 = arith.constant 0 : index
    %29 = vector.load %arg8[%c0_19, %c0_20] : memref<8x128xf32, #tpu.memory_space<vmem>>, vector<8x128xf32>
    tpu.vector_store %arg8[%c0_19, %c0_20], %28 {strides = array<i32>} : memref<8x128xf32, #tpu.memory_space<vmem>>, vector<8x128xf32>,
    return
  }
  func.func @transform_0(%arg0: i32) -> (i32, i32) {
    %c0_i32 = arith.constant 0 : i32
    %c0_i32_0 = arith.constant 0 : i32
    return %arg0, %c0_i32 : i32, i32
  }
  func.func @transform_1(%arg0: i32) -> (i32, i32) {
    %c0_i32 = arith.constant 0 : i32
    %c0_i32_0 = arith.constant 0 : i32
    %c0_i32_1 = arith.constant 0 : i32
    return %c0_i32, %c0_i32_0 : i32, i32
  }
  func.func @transform_2(%arg0: i32) -> (i32, i32) {
    %c0_i32 = arith.constant 0 : i32
    %c0_i32_0 = arith.constant 0 : i32
    %c0_i32_1 = arith.constant 0 : i32
    return %c0_i32, %c0_i32_0 : i32, i32
  }
  func.func @transform_3(%arg0: i32) -> (i32, i32) {
    %c0_i32 = arith.constant 0 : i32
    %c0_i32_0 = arith.constant 0 : i32
    %c0_i32_1 = arith.constant 0 : i32
    return %c0_i32, %c0_i32_0 : i32, i32
  }
  func.func @transform_4(%arg0: i32) -> (i32, i32) {
    %c0_i32 = arith.constant 0 : i32
    %c0_i32_0 = arith.constant 0 : i32
    %c0_i32_1 = arith.constant 0 : i32
    return %c0_i32, %c0_i32_0 : i32, i32
  }
  func.func @transform_5(%arg0: i32) -> (i32, i32) {
    %c0_i32 = arith.constant 0 : i32
    %c0_i32_0 = arith.constant 0 : i32
    %c0_i32_1 = arith.constant 0 : i32
    return %c0_i32, %c0_i32_0 : i32, i32
  }
  func.func @transform_6(%arg0: i32) -> (i32, i32) {
    %c0_i32 = arith.constant 0 : i32
    %c0_i32_0 = arith.constant 0 : i32
    %c0_i32_1 = arith.constant 0 : i32
    return %c0_i32, %c0_i32_0 : i32, i32
  }
  func.func @transform_7(%arg0: i32) -> (i32, i32) {
    %c0_i32 = arith.constant 0 : i32
    %c0_i32_0 = arith.constant 0 : i32
    return %arg0, %c0_i32 : i32, i32
  }
}

module attributes {stable_mosaic.version = 11 : i64} {
  func.func @_actor_kernel(%arg0: i32, %arg1: memref<8x16xf32, #tpu.memory_space<vmem>>, %arg2: memref<16x32xf32, #tpu.memory_space<vmem>>, %arg3: memref<1x32xf32, #tpu.memory_space<vmem>>, %arg4: memref<32x32xf32, #tpu.memory_space<vmem>>, %arg5: memref<1x32xf32, #tpu.memory_space<vmem>>, %arg6: memref<32x128xf32, #tpu.memory_space<vmem>>, %arg7: memref<1x128xf32, #tpu.memory_space<vmem>>, %arg8: memref<8x128xf32, #tpu.memory_space<vmem>>) attributes {dimension_semantics = [#tpu.dimension_semantics<parallel>], iteration_bounds = array<i64: 3>, scalar_prefetch = 0 : i64, scratch_operands = 0 : i64, tpu.core_type = #tpu.core_type<tc>, window_params = [{transform_indices = @transform_0, window_bounds = array<i64: 8, 16>}, {pipeline_mode = #tpu.pipeline_mode<synchronous>, transform_indices = @transform_1, window_bounds = array<i64: 16, 32>}, {pipeline_mode = #tpu.pipeline_mode<synchronous>, transform_indices = @transform_2, window_bounds = array<i64: 1, 32>}, {pipeline_mode = #tpu.pipeline_mode<synchronous>, transform_indices = @transform_3, window_bounds = array<i64: 32, 32>}, {pipeline_mode = #tpu.pipeline_mode<synchronous>, transform_indices = @transform_4, window_bounds = array<i64: 1, 32>}, {pipeline_mode = #tpu.pipeline_mode<synchronous>, transform_indices = @transform_5, window_bounds = array<i64: 32, 128>}, {pipeline_mode = #tpu.pipeline_mode<synchronous>, transform_indices = @transform_6, window_bounds = array<i64: 1, 128>}, {transform_indices = @transform_7, window_bounds = array<i64: 8, 128>}]} {
    %c0 = arith.constant 0 : index
    %c0_0 = arith.constant 0 : index
    %0 = vector.load %arg1[%c0, %c0_0] : memref<8x16xf32, #tpu.memory_space<vmem>>, vector<8x16xf32>
    %c0_1 = arith.constant 0 : index
    %c0_2 = arith.constant 0 : index
    %1 = vector.load %arg2[%c0_1, %c0_2] : memref<16x32xf32, #tpu.memory_space<vmem>>, vector<16x32xf32>
    %cst = arith.constant dense<0.000000e+00> : vector<8x32xf32>
    %2 = tpu.matmul %0, %1, %cst {dimension_numbers = #tpu.dot_dimension_numbers<[1], [0], [0], [1], [0, 0, 1, 1], [], []>} : vector<8x16xf32>, vector<16x32xf32>, vector<8x32xf32> -> vector<8x32xf32>
    %c0_3 = arith.constant 0 : index
    %c0_4 = arith.constant 0 : index
    %3 = vector.load %arg3[%c0_3, %c0_4] : memref<1x32xf32, #tpu.memory_space<vmem>>, vector<1x32xf32>
    %4 = vector.broadcast %3 : vector<1x32xf32> to vector<8x32xf32>
    %5 = arith.addf %2, %4 : vector<8x32xf32>
    %cst_5 = arith.constant 0.000000e+00 : f32
    %6 = vector.broadcast %cst_5 : f32 to vector<8x32xf32>
    %7 = arith.maximumf %5, %6 : vector<8x32xf32>
    %c0_6 = arith.constant 0 : index
    %c0_7 = arith.constant 0 : index
    %8 = vector.load %arg4[%c0_6, %c0_7] : memref<32x32xf32, #tpu.memory_space<vmem>>, vector<32x32xf32>
    %cst_8 = arith.constant dense<0.000000e+00> : vector<8x32xf32>
    %9 = tpu.matmul %7, %8, %cst_8 {dimension_numbers = #tpu.dot_dimension_numbers<[1], [0], [0], [1], [0, 0, 1, 1], [], []>} : vector<8x32xf32>, vector<32x32xf32>, vector<8x32xf32> -> vector<8x32xf32>
    %c0_9 = arith.constant 0 : index
    %c0_10 = arith.constant 0 : index
    %10 = vector.load %arg5[%c0_9, %c0_10] : memref<1x32xf32, #tpu.memory_space<vmem>>, vector<1x32xf32>
    %11 = vector.broadcast %10 : vector<1x32xf32> to vector<8x32xf32>
    %12 = arith.addf %9, %11 : vector<8x32xf32>
    %cst_11 = arith.constant 0.000000e+00 : f32
    %13 = vector.broadcast %cst_11 : f32 to vector<8x32xf32>
    %14 = arith.maximumf %12, %13 : vector<8x32xf32>
    %c0_12 = arith.constant 0 : index
    %c0_13 = arith.constant 0 : index
    %15 = vector.load %arg6[%c0_12, %c0_13] : memref<32x128xf32, #tpu.memory_space<vmem>>, vector<32x128xf32>
    %cst_14 = arith.constant dense<0.000000e+00> : vector<8x128xf32>
    %16 = tpu.matmul %14, %15, %cst_14 {dimension_numbers = #tpu.dot_dimension_numbers<[1], [0], [0], [1], [0, 0, 1, 1], [], []>} : vector<8x32xf32>, vector<32x128xf32>, vector<8x128xf32> -> vector<8x128xf32>
    %c0_15 = arith.constant 0 : index
    %c0_16 = arith.constant 0 : index
    %17 = vector.load %arg7[%c0_15, %c0_16] : memref<1x128xf32, #tpu.memory_space<vmem>>, vector<1x128xf32>
    %18 = vector.broadcast %17 : vector<1x128xf32> to vector<8x128xf32>
    %19 = arith.addf %16, %18 : vector<8x128xf32>
    %20 = tpu.iota {dimensions = array<i32: 1>} : vector<8x128xi32>
    %cst_17 = arith.constant -2.000000e+01 : f32
    %cst_18 = arith.constant 2.000000e+00 : f32
    %21 = vector.broadcast %cst_17 : f32 to vector<8x128xf32>
    %22 = arith.maximumf %21, %19 : vector<8x128xf32>
    %23 = vector.broadcast %cst_18 : f32 to vector<8x128xf32>
    %24 = arith.minimumf %23, %22 : vector<8x128xf32>
    %25 = math.exp %24 : vector<8x128xf32>
    %c8_i32 = arith.constant 8 : i32
    %26 = vector.broadcast %c8_i32 : i32 to vector<8x128xi32>
    %27 = arith.cmpi sge, %20, %26 : vector<8x128xi32>
    %28 = arith.select %27, %25, %19 : vector<8x128xi1>, vector<8x128xf32>
    %c0_19 = arith.constant 0 : index
    %c0_20 = arith.constant 0 : index
    %29 = vector.load %arg8[%c0_19, %c0_20] : memref<8x128xf32, #tpu.memory_space<vmem>>, vector<8x128xf32>
    tpu.vector_store %arg8[%c0_19, %c0_20], %28 {strides = array<i32>} : memref<8x128xf32, #tpu.memory_space<vmem>>, vector<8x128xf32>,
    return
  }
  func.func @transform_0(%arg0: i32) -> (i32, i32) {
    %c0_i32 = arith.constant 0 : i32
    %c0_i32_0 = arith.constant 0 : i32
    return %arg0, %c0_i32 : i32, i32
  }
  func.func @transform_1(%arg0: i32) -> (i32, i32) {
    %c0_i32 = arith.constant 0 : i32
    %c0_i32_0 = arith.constant 0 : i32
    %c0_i32_1 = arith.constant 0 : i32
    return %c0_i32, %c0_i32_0 : i32, i32
  }
  func.func @transform_2(%arg0: i32) -> (i32, i32) {
    %c0_i32 = arith.constant 0 : i32
    %c0_i32_0 = arith.constant 0 : i32
    %c0_i32_1 = arith.constant 0 : i32
    return %c0_i32, %c0_i32_0 : i32, i32
  }
  func.func @transform_3(%arg0: i32) -> (i32, i32) {
    %c0_i32 = arith.constant 0 : i32
    %c0_i32_0 = arith.constant 0 : i32
    %c0_i32_1 = arith.constant 0 : i32
    return %c0_i32, %c0_i32_0 : i32, i32
  }
  func.func @transform_4(%arg0: i32) -> (i32, i32) {
    %c0_i32 = arith.constant 0 : i32
    %c0_i32_0 = arith.constant 0 : i32
    %c0_i32_1 = arith.constant 0 : i32
    return %c0_i32, %c0_i32_0 : i32, i32
  }
  func.func @transform_5(%arg0: i32) -> (i32, i32) {
    %c0_i32 = arith.constant 0 : i32
    %c0_i32_0 = arith.constant 0 : i32
    %c0_i32_1 = arith.constant 0 : i32
    return %c0_i32, %c0_i32_0 : i32, i32
  }
  func.func @transform_6(%arg0: i32) -> (i32, i32) {
    %c0_i32 = arith.constant 0 : i32
    %c0_i32_0 = arith.constant 0 : i32
    %c0_i32_1 = arith.constant 0 : i32
    return %c0_i32, %c0_i32_0 : i32, i32
  }
  func.func @transform_7(%arg0: i32) -> (i32, i32) {
    %c0_i32 = arith.constant 0 : i32
    %c0_i32_0 = arith.constant 0 : i32
    return %arg0, %c0_i32 : i32, i32
  }
}

</mosaic_0001>

<llo_original>
// kernel: tpu_custom_call.1
$region0: #{tpu_custom_call.1}
  #allocation0 [shape = 'u32[]', space=smem, size = 0x4, offset = 0x4, fixed_abs, tag = 'smem constant byte address 0x4 - core index']
  #allocation1 [shape = 'u32[144,128]{1,0:T(1,128)}', space=vmem, size = 0x12000, scoped, tag = 'internal scratch']
  %s0 = inlined_call_operand.vmem [shape: f32[20,16], index: 0, kind: input, shape index: {}]
  %s1 = inlined_call_operand.vmem [shape: f32[16,32], index: 1, kind: input, shape index: {}]
  %s2 = inlined_call_operand.vmem [shape: f32[1,32], index: 2, kind: input, shape index: {}]
  %s3 = inlined_call_operand.vmem [shape: f32[32,32], index: 3, kind: input, shape index: {}]
  %s4 = inlined_call_operand.vmem [shape: f32[1,32], index: 4, kind: input, shape index: {}]
  %s5 = inlined_call_operand.hbm [shape: f32[32,128], index: 5, kind: input, shape index: {}]
  %s6 = inlined_call_operand.vmem [shape: f32[1,128], index: 6, kind: input, shape index: {}]
  %s7 = inlined_call_operand.hbm [shape: f32[20,128], index: 7, kind: output, shape index: {}]
  %s8 = sld [smem:[#allocation0]]
  $region65: #{tpu_custom_call.1} parent=0
    _
  %s10 = ssub.s32 1, %s8
  %s11 = scalar_select 0, %s10, %s8
  $region1: #{tpu_custom_call.1} parent=0
    #allocation2 [shape = 'u8[16384]{0}', space=vmem, size = 0x4000, scoped, tag = 'input window, operand 5, single buffered']
    #allocation3 [shape = 's32[2]{0}', space=sflag, size = 0x8, scoped, tag = 'scoped memory for tpu_custom_call.1']
    #allocation4 [shape = 's32[2]{0}', space=sflag, size = 0x8, scoped, tag = 'scoped memory for tpu_custom_call.1']
    #allocation5 [shape = 'u8[8192]{0}', space=vmem, size = 0x2000, scoped, tag = 'output window, operand 0']
    %12 = vsyncpa [#allocation3], 0
    %13 = vsyncpa [#allocation4], 0
    %s14 = scalar_lea.sflag [#allocation4], 1
    %15 = vsyncpa %s14, 0
    loop: start=0, step=1, limit=5
    $region2: #{tpu_custom_call.1} parent=1 // loop_pre_header
      _
    $region3: #{tpu_custom_call.1} parent=1 // loop_header
      %s17 = sphi 0, %s21
      %p18 = scmp.ge.s32.totalorder %s17, 5
      %s27 = sphi 0, %s29
      %s30 = sphi 0, %s27
      %s31 = sphi 0, %s30
      %s47 = sphi 0, %s31
      %s51 = sphi 0, %s51
      %s53 = sphi 0, %s51
      %s54 = sphi 0, %s53
      %s68 = sphi 0, %s54
      %s72 = sphi 0, %s72
      %s74 = sphi 0, %s72
      %s75 = sphi 0, %s74
      %s89 = sphi 0, %s75
      %s93 = sphi 0, %s93
      %s95 = sphi 0, %s93
      %s96 = sphi 0, %s95
      %s110 = sphi 0, %s96
      %s114 = sphi 0, %s114
      %s116 = sphi 0, %s114
      %s117 = sphi 0, %s116
      %s131 = sphi 0, %s117
      %s135 = sphi 0, %s135
      %s137 = sphi 0, %s135
      %s138 = sphi 0, %s137
      %s152 = sphi 0, %s138
      %s156 = sphi 0, %s156
      %s158 = sphi 0, %s156
      %s159 = sphi 0, %s158
      %s173 = sphi 0, %s159
      %s179 = sphi 0, %s181
      %s182 = sphi 0, %s179
      %s183 = sphi 0, %s182
      %s199 = sphi 0, %s183
    $region4: #{tpu_custom_call.1} parent=1 // loop_header_branch
      %20 = sbr.rel (%p18) target = $region8
    $region5: #{tpu_custom_call.1} parent=1 // loop_body
      %s22 = ssub.s32 %s17, 1
      %s23 = ssub.s32 %s17, 2
      %s24 = sadd.s32 %s17, 1
      %s25 = ssub.s32 %s17, %s24
      %p26 = scmp.eq.s32.totalorder %s25, 0
      %s28 = sadd.s32 %s27, 1
      %s29 = scalar_select %p26, %s27, %s28
      %p32 = pneg %p26
      %p33 = scmp.eq.s32.totalorder %s17, 2
      %p34 = por %p32, %p33
      %p35 = scmp.ne.s32.totalorder %s27, %s30
      %p36 = scmp.eq.s32.totalorder %s17, 0
      %p37 = por %p35, %p36
      %p38 = scmp.ne.s32.totalorder %s27, %s30
      %p39 = scmp.eq.s32.totalorder %s22, 2
      %p40 = por %p38, %p39
      %p41 = scmp.ne.s32.totalorder %s30, %s31
      %p42 = scmp.eq.s32.totalorder %s22, 0
      %p43 = por %p41, %p42
      %p44 = scmp.ne.s32.totalorder %s30, %s31
      %p45 = scmp.eq.s32.totalorder %s23, 2
      %p46 = por %p44, %p45
      %p48 = scmp.ne.s32.totalorder %s31, %s47
      %p49 = scmp.eq.s32.totalorder %s23, 0
      %p50 = por %p48, %p49
      %s52 = sadd.s32 %s51, 1
      %p55 = scmp.eq.s32.totalorder %s17, 2
      %p56 = scmp.ne.s32.totalorder %s51, %s53
      %p57 = scmp.eq.s32.totalorder %s17, 0
      %p58 = por %p56, %p57
      %p59 = scmp.ne.s32.totalorder %s51, %s53
      %p60 = scmp.eq.s32.totalorder %s22, 2
      %p61 = por %p59, %p60
      %p62 = scmp.ne.s32.totalorder %s53, %s54
      %p63 = scmp.eq.s32.totalorder %s22, 0
      %p64 = por %p62, %p63
      %p65 = scmp.ne.s32.totalorder %s53, %s54
      %p66 = scmp.eq.s32.totalorder %s23, 2
      %p67 = por %p65, %p66
      %p69 = scmp.ne.s32.totalorder %s54, %s68
      %p70 = scmp.eq.s32.totalorder %s23, 0
      %p71 = por %p69, %p70
      %s73 = sadd.s32 %s72, 1
      %p76 = scmp.eq.s32.totalorder %s17, 2
      %p77 = scmp.ne.s32.totalorder %s72, %s74
      %p78 = scmp.eq.s32.totalorder %s17, 0
      %p79 = por %p77, %p78
      %p80 = scmp.ne.s32.totalorder %s72, %s74
      %p81 = scmp.eq.s32.totalorder %s22, 2
      %p82 = por %p80, %p81
      %p83 = scmp.ne.s32.totalorder %s74, %s75
      %p84 = scmp.eq.s32.totalorder %s22, 0
      %p85 = por %p83, %p84
      %p86 = scmp.ne.s32.totalorder %s74, %s75
      %p87 = scmp.eq.s32.totalorder %s23, 2
      %p88 = por %p86, %p87
      %p90 = scmp.ne.s32.totalorder %s75, %s89
      %p91 = scmp.eq.s32.totalorder %s23, 0
      %p92 = por %p90, %p91
      %s94 = sadd.s32 %s93, 1
      %p97 = scmp.eq.s32.totalorder %s17, 2
      %p98 = scmp.ne.s32.totalorder %s93, %s95
      %p99 = scmp.eq.s32.totalorder %s17, 0
      %p100 = por %p98, %p99
      %p101 = scmp.ne.s32.totalorder %s93, %s95
      %p102 = scmp.eq.s32.totalorder %s22, 2
      %p103 = por %p101, %p102
      %p104 = scmp.ne.s32.totalorder %s95, %s96
      %p105 = scmp.eq.s32.totalorder %s22, 0
      %p106 = por %p104, %p105
      %p107 = scmp.ne.s32.totalorder %s95, %s96
      %p108 = scmp.eq.s32.totalorder %s23, 2
      %p109 = por %p107, %p108
      %p111 = scmp.ne.s32.totalorder %s96, %s110
      %p112 = scmp.eq.s32.totalorder %s23, 0
      %p113 = por %p111, %p112
      %s115 = sadd.s32 %s114, 1
      %p118 = scmp.eq.s32.totalorder %s17, 2
      %p119 = scmp.ne.s32.totalorder %s114, %s116
      %p120 = scmp.eq.s32.totalorder %s17, 0
      %p121 = por %p119, %p120
      %p122 = scmp.ne.s32.totalorder %s114, %s116
      %p123 = scmp.eq.s32.totalorder %s22, 2
      %p124 = por %p122, %p123
      %p125 = scmp.ne.s32.totalorder %s116, %s117
      %p126 = scmp.eq.s32.totalorder %s22, 0
      %p127 = por %p125, %p126
      %p128 = scmp.ne.s32.totalorder %s116, %s117
      %p129 = scmp.eq.s32.totalorder %s23, 2
      %p130 = por %p128, %p129
      %p132 = scmp.ne.s32.totalorder %s117, %s131
      %p133 = scmp.eq.s32.totalorder %s23, 0
      %p134 = por %p132, %p133
      %s136 = sadd.s32 %s135, 1
      %p139 = scmp.eq.s32.totalorder %s17, 2
      %p140 = scmp.ne.s32.totalorder %s135, %s137
      %p141 = scmp.eq.s32.totalorder %s17, 0
      %p142 = por %p140, %p141
      %p143 = scmp.ne.s32.totalorder %s135, %s137
      %p144 = scmp.eq.s32.totalorder %s22, 2
      %p145 = por %p143, %p144
      %p146 = scmp.ne.s32.totalorder %s137, %s138
      %p147 = scmp.eq.s32.totalorder %s22, 0
      %p148 = por %p146, %p147
      %p149 = scmp.ne.s32.totalorder %s137, %s138
      %p150 = scmp.eq.s32.totalorder %s23, 2
      %p151 = por %p149, %p150
      %p153 = scmp.ne.s32.totalorder %s138, %s152
      %p154 = scmp.eq.s32.totalorder %s23, 0
      %p155 = por %p153, %p154
      %s157 = sadd.s32 %s156, 1
      %p160 = scmp.eq.s32.totalorder %s17, 2
      %p161 = scmp.ne.s32.totalorder %s156, %s158
      %p162 = scmp.eq.s32.totalorder %s17, 0
      %p163 = por %p161, %p162
      %p164 = scmp.ne.s32.totalorder %s156, %s158
      %p165 = scmp.eq.s32.totalorder %s22, 2
      %p166 = por %p164, %p165
      %p167 = scmp.ne.s32.totalorder %s158, %s159
      %p168 = scmp.eq.s32.totalorder %s22, 0
      %p169 = por %p167, %p168
      %p170 = scmp.ne.s32.totalorder %s158, %s159
      %p171 = scmp.eq.s32.totalorder %s23, 2
      %p172 = por %p170, %p171
      %p174 = scmp.ne.s32.totalorder %s159, %s173
      %p175 = scmp.eq.s32.totalorder %s23, 0
      %p176 = por %p174, %p175
      %s177 = ssub.s32 %s17, %s24
      %p178 = scmp.eq.s32.totalorder %s177, 0
      %s180 = sadd.s32 %s179, 1
      %s181 = scalar_select %p178, %s179, %s180
      %p184 = pneg %p178
      %p185 = scmp.eq.s32.totalorder %s17, 2
      %p186 = por %p184, %p185
      %p187 = scmp.ne.s32.totalorder %s179, %s182
      %p188 = scmp.eq.s32.totalorder %s17, 0
      %p189 = por %p187, %p188
      %p190 = scmp.ne.s32.totalorder %s179, %s182
      %p191 = scmp.eq.s32.totalorder %s22, 2
      %p192 = por %p190, %p191
      %p193 = scmp.ne.s32.totalorder %s182, %s183
      %p194 = scmp.eq.s32.totalorder %s22, 0
      %p195 = por %p193, %p194
      %p196 = scmp.ne.s32.totalorder %s182, %s183
      %p197 = scmp.eq.s32.totalorder %s23, 2
      %p198 = por %p196, %p197
      %p200 = scmp.ne.s32.totalorder %s183, %s199
      %p201 = scmp.eq.s32.totalorder %s23, 0
      %p202 = por %p200, %p201
      %p203 = scmp.le.s32.totalorder 1, %s17
      %p204 = scmp.lt.s32.totalorder %s17, 4
      %p205 = pnand %p203, %p204
      %p206 = pneg %p205
      // Predicated region
      $region9: #{tpu_custom_call.1} parent=5 // pred_check
        _
      $region10: #{tpu_custom_call.1} parent=5 // pred_check_branch
        %208 = sbr.rel (%p205) target = $region12
      $region11: #{tpu_custom_call.1} parent=5 // pred_region
        %s209 = ssub.s32 %s17, 1
        // Predicated region
        $region13: #{tpu_custom_call.1} parent=11 // pred_check
          %p210 = pneg %p64
        $region14: #{tpu_custom_call.1} parent=11 // pred_check_branch
          %212 = sbr.rel (%p210) target = $region16
        $region15: #{tpu_custom_call.1} parent=11 // pred_region
          _
        $region16: #{tpu_custom_call.1} parent=11 // pred_fallthru
          _
        // Predicated region
        $region17: #{tpu_custom_call.1} parent=11 // pred_check
          %p213 = pneg %p85
        $region18: #{tpu_custom_call.1} parent=11 // pred_check_branch
          %215 = sbr.rel (%p213) target = $region20
        $region19: #{tpu_custom_call.1} parent=11 // pred_region
          _
        $region20: #{tpu_custom_call.1} parent=11 // pred_fallthru
          _
        // Predicated region
        $region21: #{tpu_custom_call.1} parent=11 // pred_check
          %p216 = pneg %p106
        $region22: #{tpu_custom_call.1} parent=11 // pred_check_branch
          %218 = sbr.rel (%p216) target = $region24
        $region23: #{tpu_custom_call.1} parent=11 // pred_region
          _
        $region24: #{tpu_custom_call.1} parent=11 // pred_fallthru
          _
        // Predicated region
        $region25: #{tpu_custom_call.1} parent=11 // pred_check
          %p219 = pneg %p127
        $region26: #{tpu_custom_call.1} parent=11 // pred_check_branch
          %221 = sbr.rel (%p219) target = $region28
        $region27: #{tpu_custom_call.1} parent=11 // pred_region
          _
        $region28: #{tpu_custom_call.1} parent=11 // pred_fallthru
          _
        // Predicated region
        $region29: #{tpu_custom_call.1} parent=11 // pred_check
          %p222 = pneg %p148
        $region30: #{tpu_custom_call.1} parent=11 // pred_check_branch
          %224 = sbr.rel (%p222) target = $region32
        $region31: #{tpu_custom_call.1} parent=11 // pred_region
          %s226 = ssub.s32 512, 512
          %227 = vsyncadd [#allocation3], %s226
          %s228 = sshll.u32 [#allocation2], 4
          %s229 = int_to_ptr.vmem [resolvable:$true] %s228
          %234 = dma.hbm_to_vmem [thread:$0]  %s5, 512, %s229, [#allocation3], 128, 128, 8
        $region32: #{tpu_custom_call.1} parent=11 // pred_fallthru
          _
        // Predicated region
        $region33: #{tpu_custom_call.1} parent=11 // pred_check
          %p235 = pneg %p169
        $region34: #{tpu_custom_call.1} parent=11 // pred_check_branch
          %237 = sbr.rel (%p235) target = $region36
        $region35: #{tpu_custom_call.1} parent=11 // pred_region
          _
        $region36: #{tpu_custom_call.1} parent=11 // pred_fallthru
          _
      $region12: #{tpu_custom_call.1} parent=5 // pred_fallthru
        _
      %p238 = scmp.lt.s32.totalorder %s17, 3
      // Predicated region
      $region37: #{tpu_custom_call.1} parent=5 // pred_check
        %p239 = pneg %p238
      $region38: #{tpu_custom_call.1} parent=5 // pred_check_branch
        %241 = sbr.rel (%p239) target = $region40
      $region39: #{tpu_custom_call.1} parent=5 // pred_region
        // Predicated region
        $region41: #{tpu_custom_call.1} parent=39 // pred_check
          %p242 = pneg %p37
        $region42: #{tpu_custom_call.1} parent=39 // pred_check_branch
          %244 = sbr.rel (%p242) target = $region44
        $region43: #{tpu_custom_call.1} parent=39 // pred_region
          %p245 = scmp.lt.s32.totalorder %s17, 2
          %s246 = scalar_select %p245, %s17, 2
          %s247 = smul.addr %s246, 8
          %s248 = scalar_lea.vmem %s0, %s247
        $region44: #{tpu_custom_call.1} parent=39 // pred_fallthru
          _
      $region40: #{tpu_custom_call.1} parent=5 // pred_fallthru
        _
      %p249 = scmp.le.s32.totalorder 1, %s17
      %p250 = scmp.lt.s32.totalorder %s17, 4
      %p251 = pnand %p249, %p250
      %p252 = pneg %p251
      // Predicated region
      $region45: #{tpu_custom_call.1} parent=5 // pred_check
        _
      $region46: #{tpu_custom_call.1} parent=5 // pred_check_branch
        %254 = sbr.rel (%p251) target = $region48
      $region47: #{tpu_custom_call.1} parent=5 // pred_region
        %s255 = ssub.s32 %s17, 1
        // Predicated region
        $region49: #{tpu_custom_call.1} parent=47 // pred_check
          %p256 = pneg %p148
        $region50: #{tpu_custom_call.1} parent=47 // pred_check_branch
          %258 = sbr.rel (%p256) target = $region52
        $region51: #{tpu_custom_call.1} parent=47 // pred_region
          %259 = dma.done [#allocation3], 512
        $region52: #{tpu_custom_call.1} parent=47 // pred_fallthru
          _
        %p260 = scmp.lt.s32.totalorder %s22, 2
        %s261 = scalar_select %p260, %s22, 2
        %s262 = smul.addr %s261, 8
        %s263 = scalar_lea.vmem %s0, %s262
        %p264 = pneg %p43
        %p265 = pneg %p40
        %p266 = pneg %p64
        %p267 = pneg %p61
        %p268 = pneg %p85
        %p269 = pneg %p82
        %p270 = pneg %p106
        %p271 = pneg %p103
        %p272 = pneg %p127
        %p273 = pneg %p124
        %p274 = pneg %p148
        %p275 = pneg %p145
        %p276 = pneg %p169
        %p277 = pneg %p166
        %p278 = pneg %p195
        %p279 = pneg %p192
        %s280 = sand.u32 %s182, 1
        %s281 = scalar_lea.sflag [#allocation4], %s280
        %s282 = sand.u32 %s182, 1
        %s283 = smul.addr %s282, 8
        %s284 = scalar_lea.vmem [#allocation5], %s283
        %p285 = scmp.lt.s32.totalorder %s22, 2
        %s286 = scalar_select %p285, %s22, 2
        %s287 = smul.addr %s286, 8
        %s288 = scalar_lea.vmem %s0, %s287
        %v289 = vld [vmem:[%s288] sm:$0xff]
        %v290 = vld [vmem:[%s1] sm:$0xff]
        %v291 = vld [vmem:[%s1 + $0x8] sm:$0xff]
        %v292 = vld [vmem:[%s2] sm:$0x1]
        %v294 = vlaneseq
        %v295 = vshrl.u32 %v294, 7
        %v296 = vsub.s32 0, %v295
        %v297 = vrot.slane %v292, %v296
        %vm299 = vcmask 130048
        %v301 = vsel %vm299, %v289, 0
        %303 = vmatprep.subr.mxu0 0.0
        %304 = vmatpush1.msra.mxu0 %v290
        %305 = vmatprep.subr.mxu0 0.0
        %306 = vmatpush1.msra.mxu0 %v291
        %307 = vmatprep.subr.mxu0 0.0
        %308 = vmatpush1.msra.mxu0 0.0
        %309 = vmatprep.subr.mxu0 0.0
        %310 = vmatpush1.msra.mxu0 0.0
        %311 = vmatprep.subr.mxu0 0.0
        %312 = vmatpush1.msra.mxu0 0.0
        %313 = vmatprep.subr.mxu0 0.0
        %314 = vmatpush1.msra.mxu0 0.0
        %315 = vmatprep.subr.mxu0 0.0
        %316 = vmatpush1.msra.mxu0 0.0
        %317 = vmatprep.subr.mxu0 0.0
        %318 = vmatpush1.msra.mxu0 0.0
        %319 = vmatprep.subr.mxu0 0.0
        %320 = vmatpush1.msra.mxu0 0.0
        %321 = vmatprep.subr.mxu0 0.0
        %322 = vmatpush1.msra.mxu0 0.0
        %323 = vmatprep.subr.mxu0 0.0
        %324 = vmatpush1.msra.mxu0 0.0
        %325 = vmatprep.subr.mxu0 0.0
        %326 = vmatpush1.msra.mxu0 0.0
        %327 = vmatprep.subr.mxu0 0.0
        %328 = vmatpush1.msra.mxu0 0.0
        %329 = vmatprep.subr.mxu0 0.0
        %330 = vmatpush1.msra.mxu0 0.0
        %331 = vmatprep.subr.mxu0 0.0
        %332 = vmatpush1.msra.mxu0 0.0
        %333 = vmatprep.subr.mxu0 0.0
        %334 = vmatpush1.msra.mxu0 0.0
        %335 = vmatprep.subr.mxu0 0.0
        %336 = vmatpush1.msra.mxu0 0.0
        %337 = vmatprep.subr.mxu0 0.0
        %338 = vmatpush1.msra.mxu0 0.0
        %339 = vmatprep.subr.mxu0 0.0
        %340 = vmatpush1.msra.mxu0 0.0
        %341 = vmatprep.subr.mxu0 0.0
        %342 = vmatpush1.msra.mxu0 0.0
        %343 = vmatprep.subr.mxu0 0.0
        %344 = vmatpush1.msra.mxu0 0.0
        %345 = vmatprep.subr.mxu0 0.0
        %346 = vmatpush1.msra.mxu0 0.0
        %347 = vmatprep.subr.mxu0 0.0
        %348 = vmatpush1.msra.mxu0 0.0
        %349 = vmatprep.subr.mxu0 0.0
        %350 = vmatpush1.msra.mxu0 0.0
        %351 = vmatprep.subr.mxu0 0.0
        %352 = vmatpush1.msra.mxu0 0.0
        %353 = vmatprep.subr.mxu0 0.0
        %354 = vmatpush1.msra.mxu0 0.0
        %355 = vmatprep.subr.mxu0 0.0
        %356 = vmatpush1.msra.mxu0 0.0
        %357 = vmatprep.subr.mxu0 0.0
        %358 = vmatpush1.msra.mxu0 0.0
        %359 = vmatprep.subr.mxu0 0.0
        %360 = vmatpush1.msra.mxu0 0.0
        %361 = vmatprep.subr.mxu0 0.0
        %362 = vmatpush1.msra.mxu0 0.0
        %363 = vmatprep.subr.mxu0 0.0
        %364 = vmatpush1.msra.mxu0 0.0
        %365 = vmatprep.subr.mxu0 0.0
        %366 = vmatpush1.msra.mxu0 0.0
        %367 = vmatprep.mubr.f32.mxu0 0.0
        %368 = vmatmul.mubr.f32.gmra.mrb[0].mxu0 %v301
        %v369 = vpop.f32.mrb[0].mxu0
        %v370 = vadd.f32 %v297, %v369
        %v371 = vpop.f32.mrb[0].mxu0
        %372 = vdwg.mxu0
        %v373 = vmax.f32 %v370, 0.0
        %v374 = vld [vmem:[%s3] sm:$0xff]
        %v375 = vld [vmem:[%s3 + $0x8] sm:$0xff]
        %v376 = vld [vmem:[%s3 + $0x10] sm:$0xff]
        %v377 = vld [vmem:[%s3 + $0x18] sm:$0xff]
        %v378 = vld [vmem:[%s4] sm:$0x1]
        %v380 = vlaneseq
        %v381 = vshrl.u32 %v380, 7
        %v382 = vsub.s32 0, %v381
        %v383 = vrot.slane %v378, %v382
        %vm385 = vcmask 261120
        %v387 = vsel %vm385, %v373, 0
        %389 = vmatprep.subr.mxu0 0.0
        %390 = vmatpush1.msra.mxu0 %v374
        %391 = vmatprep.subr.mxu0 0.0
        %392 = vmatpush1.msra.mxu0 %v375
        %393 = vmatprep.subr.mxu0 0.0
        %394 = vmatpush1.msra.mxu0 %v376
        %395 = vmatprep.subr.mxu0 0.0
        %396 = vmatpush1.msra.mxu0 %v377
        %397 = vmatprep.subr.mxu0 0.0
        %398 = vmatpush1.msra.mxu0 0.0
        %399 = vmatprep.subr.mxu0 0.0
        %400 = vmatpush1.msra.mxu0 0.0
        %401 = vmatprep.subr.mxu0 0.0
        %402 = vmatpush1.msra.mxu0 0.0
        %403 = vmatprep.subr.mxu0 0.0
        %404 = vmatpush1.msra.mxu0 0.0
        %405 = vmatprep.subr.mxu0 0.0
        %406 = vmatpush1.msra.mxu0 0.0
        %407 = vmatprep.subr.mxu0 0.0
        %408 = vmatpush1.msra.mxu0 0.0
        %409 = vmatprep.subr.mxu0 0.0
        %410 = vmatpush1.msra.mxu0 0.0
        %411 = vmatprep.subr.mxu0 0.0
        %412 = vmatpush1.msra.mxu0 0.0
        %413 = vmatprep.subr.mxu0 0.0
        %414 = vmatpush1.msra.mxu0 0.0
        %415 = vmatprep.subr.mxu0 0.0
        %416 = vmatpush1.msra.mxu0 0.0
        %417 = vmatprep.subr.mxu0 0.0
        %418 = vmatpush1.msra.mxu0 0.0
        %419 = vmatprep.subr.mxu0 0.0
        %420 = vmatpush1.msra.mxu0 0.0
        %421 = vmatprep.subr.mxu0 0.0
        %422 = vmatpush1.msra.mxu0 0.0
        %423 = vmatprep.subr.mxu0 0.0
        %424 = vmatpush1.msra.mxu0 0.0
        %425 = vmatprep.subr.mxu0 0.0
        %426 = vmatpush1.msra.mxu0 0.0
        %427 = vmatprep.subr.mxu0 0.0
        %428 = vmatpush1.msra.mxu0 0.0
        %429 = vmatprep.subr.mxu0 0.0
        %430 = vmatpush1.msra.mxu0 0.0
        %431 = vmatprep.subr.mxu0 0.0
        %432 = vmatpush1.msra.mxu0 0.0
        %433 = vmatprep.subr.mxu0 0.0
        %434 = vmatpush1.msra.mxu0 0.0
        %435 = vmatprep.subr.mxu0 0.0
        %436 = vmatpush1.msra.mxu0 0.0
        %437 = vmatprep.subr.mxu0 0.0
        %438 = vmatpush1.msra.mxu0 0.0
        %439 = vmatprep.subr.mxu0 0.0
        %440 = vmatpush1.msra.mxu0 0.0
        %441 = vmatprep.subr.mxu0 0.0
        %442 = vmatpush1.msra.mxu0 0.0
        %443 = vmatprep.subr.mxu0 0.0
        %444 = vmatpush1.msra.mxu0 0.0
        %445 = vmatprep.subr.mxu0 0.0
        %446 = vmatpush1.msra.mxu0 0.0
        %447 = vmatprep.subr.mxu0 0.0
        %448 = vmatpush1.msra.mxu0 0.0
        %449 = vmatprep.subr.mxu0 0.0
        %450 = vmatpush1.msra.mxu0 0.0
        %451 = vmatprep.subr.mxu0 0.0
        %452 = vmatpush1.msra.mxu0 0.0
        %453 = vmatprep.mubr.f32.mxu0 0.0
        %454 = vmatmul.mubr.f32.gmra.mrb[0].mxu0 %v387
        %v455 = vpop.f32.mrb[0].mxu0
        %v456 = vadd.f32 %v383, %v455
        %v457 = vpop.f32.mrb[0].mxu0
        %458 = vdwg.mxu0
        %v459 = vmax.f32 %v456, 0.0
        %v460 = vld [vmem:[#allocation2] sm:$0xff]
        %v461 = vld [vmem:[#allocation2 + $0x8] sm:$0xff]
        %v462 = vld [vmem:[#allocation2 + $0x10] sm:$0xff]
        %v463 = vld [vmem:[#allocation2 + $0x18] sm:$0xff]
        %v464 = vld [vmem:[%s6] sm:$0x1]
        %v466 = vlaneseq
        %v467 = vshrl.u32 %v466, 7
        %v468 = vsub.s32 0, %v467
        %v469 = vrot.slane %v464, %v468
        %v472 = vsel %vm385, %v459, 0
        %474 = vmatprep.subr.mxu0 0.0
        %475 = vmatpush1.msra.mxu0 %v460
        %476 = vmatprep.subr.mxu0 0.0
        %477 = vmatpush1.msra.mxu0 %v461
        %478 = vmatprep.subr.mxu0 0.0
        %479 = vmatpush1.msra.mxu0 %v462
        %480 = vmatprep.subr.mxu0 0.0
        %481 = vmatpush1.msra.mxu0 %v463
        %482 = vmatprep.subr.mxu0 0.0
        %483 = vmatpush1.msra.mxu0 0.0
        %484 = vmatprep.subr.mxu0 0.0
        %485 = vmatpush1.msra.mxu0 0.0
        %486 = vmatprep.subr.mxu0 0.0
        %487 = vmatpush1.msra.mxu0 0.0
        %488 = vmatprep.subr.mxu0 0.0
        %489 = vmatpush1.msra.mxu0 0.0
        %490 = vmatprep.subr.mxu0 0.0
        %491 = vmatpush1.msra.mxu0 0.0
        %492 = vmatprep.subr.mxu0 0.0
        %493 = vmatpush1.msra.mxu0 0.0
        %494 = vmatprep.subr.mxu0 0.0
        %495 = vmatpush1.msra.mxu0 0.0
        %496 = vmatprep.subr.mxu0 0.0
        %497 = vmatpush1.msra.mxu0 0.0
        %498 = vmatprep.subr.mxu0 0.0
        %499 = vmatpush1.msra.mxu0 0.0
        %500 = vmatprep.subr.mxu0 0.0
        %501 = vmatpush1.msra.mxu0 0.0
        %502 = vmatprep.subr.mxu0 0.0
        %503 = vmatpush1.msra.mxu0 0.0
        %504 = vmatprep.subr.mxu0 0.0
        %505 = vmatpush1.msra.mxu0 0.0
        %506 = vmatprep.subr.mxu0 0.0
        %507 = vmatpush1.msra.mxu0 0.0
        %508 = vmatprep.subr.mxu0 0.0
        %509 = vmatpush1.msra.mxu0 0.0
        %510 = vmatprep.subr.mxu0 0.0
        %511 = vmatpush1.msra.mxu0 0.0
        %512 = vmatprep.subr.mxu0 0.0
        %513 = vmatpush1.msra.mxu0 0.0
        %514 = vmatprep.subr.mxu0 0.0
        %515 = vmatpush1.msra.mxu0 0.0
        %516 = vmatprep.subr.mxu0 0.0
        %517 = vmatpush1.msra.mxu0 0.0
        %518 = vmatprep.subr.mxu0 0.0
        %519 = vmatpush1.msra.mxu0 0.0
        %520 = vmatprep.subr.mxu0 0.0
        %521 = vmatpush1.msra.mxu0 0.0
        %522 = vmatprep.subr.mxu0 0.0
        %523 = vmatpush1.msra.mxu0 0.0
        %524 = vmatprep.subr.mxu0 0.0
        %525 = vmatpush1.msra.mxu0 0.0
        %526 = vmatprep.subr.mxu0 0.0
        %527 = vmatpush1.msra.mxu0 0.0
        %528 = vmatprep.subr.mxu0 0.0
        %529 = vmatpush1.msra.mxu0 0.0
        %530 = vmatprep.subr.mxu0 0.0
        %531 = vmatpush1.msra.mxu0 0.0
        %532 = vmatprep.subr.mxu0 0.0
        %533 = vmatpush1.msra.mxu0 0.0
        %534 = vmatprep.subr.mxu0 0.0
        %535 = vmatpush1.msra.mxu0 0.0
        %536 = vmatprep.subr.mxu0 0.0
        %537 = vmatpush1.msra.mxu0 0.0
        %538 = vmatprep.mubr.f32.mxu0 0.0
        %539 = vmatmul.mubr.f32.gmra.mrb[0].mxu0 %v472
        %v540 = vpop.f32.mrb[0].mxu0
        %v541 = vadd.f32 %v469, %v540
        %v542 = vpop.f32.mrb[0].mxu0
        %543 = vdwg.mxu0
        %v544 = vlaneseq
        %v545 = vand.u32 %v544, 127
        %v546 = vmax.f32 %v541, -20.0
        %v547 = vmin.f32 %v546, 2.0
        %v548 = vmul.f32 %v547, 1.442695
        %v549 = vpow.pop %v548
        %vm550 = vcmp.ge.s32.totalorder %v545, 8
        %v551 = vsel %vm550, %v549, %v541
        %552 = vst [vmem:[%s284] sm:$0xff] %v551
        %s553 = sand.u32 %s182, 1
        %s554 = scalar_lea.sflag [#allocation4], %s553
        %s555 = sand.u32 %s182, 1
        %s556 = smul.addr %s555, 8
        %s557 = scalar_lea.vmem [#allocation5], %s556
        // Predicated region
        $region53: #{tpu_custom_call.1} parent=47 // pred_check
          %p558 = pneg %p192
        $region54: #{tpu_custom_call.1} parent=47 // pred_check_branch
          %560 = sbr.rel (%p558) target = $region56
        $region55: #{tpu_custom_call.1} parent=47 // pred_region
          %s562 = ssub.s32 128, 128
          %563 = vsyncadd %s554, %s562
          %s564 = smul.addr %s22, 128
          %s565 = scalar_lea.hbm %s7, %s564
          %s567 = sshll.u32 %s557, 4
          %s568 = int_to_ptr.vmem [resolvable:$true] %s567
          %570 = dma.vmem_to_hbm [thread:$0]  %s568, 128, %s565, %s554
        $region56: #{tpu_custom_call.1} parent=47 // pred_fallthru
          _
      $region48: #{tpu_custom_call.1} parent=5 // pred_fallthru
        _
      %p571 = scmp.le.s32.totalorder 2, %s17
      // Predicated region
      $region57: #{tpu_custom_call.1} parent=5 // pred_check
        %p572 = pneg %p571
      $region58: #{tpu_custom_call.1} parent=5 // pred_check_branch
        %574 = sbr.rel (%p572) target = $region60
      $region59: #{tpu_custom_call.1} parent=5 // pred_region
        %s575 = ssub.s32 %s17, 2
        // Predicated region
        $region61: #{tpu_custom_call.1} parent=59 // pred_check
          %p576 = pneg %p198
        $region62: #{tpu_custom_call.1} parent=59 // pred_check_branch
          %578 = sbr.rel (%p576) target = $region64
        $region63: #{tpu_custom_call.1} parent=59 // pred_region
          %s579 = sand.u32 %s183, 1
          %s580 = scalar_lea.sflag [#allocation4], %s579
          %s581 = sand.u32 %s183, 1
          %s582 = smul.addr %s581, 8
          %s583 = scalar_lea.vmem [#allocation5], %s582
          %584 = dma.done %s580, 128
        $region64: #{tpu_custom_call.1} parent=59 // pred_fallthru
          _
      $region60: #{tpu_custom_call.1} parent=5 // pred_fallthru
        _
    $region6: #{tpu_custom_call.1} parent=1 // loop_footer
      %s21 = sadd.s32 1, %s17
    $region7: #{tpu_custom_call.1} parent=1 // loop_footer_branch
      %16 = sbr.rel target = $region3
    $region8: #{tpu_custom_call.1} parent=1 // loop_exit
      _
    %585 = vsyncpa [#allocation3], 1
    %s586 = scalar_lea.sflag [#allocation3], 1
    %587 = vsyncpa %s586, 1
    %588 = vsyncpa [#allocation4], 1
    %s589 = scalar_lea.sflag [#allocation4], 1
    %590 = vsyncpa %s589, 1

// kernel: tpu_custom_call.1
$region0: #{tpu_custom_call.1}
  #allocation0 [shape = 'u32[]', space=smem, size = 0x4, offset = 0x4, fixed_abs, tag = 'smem constant byte address 0x4 - core index']
  #allocation1 [shape = 'u32[144,128]{1,0:T(1,128)}', space=vmem, size = 0x12000, scoped, tag = 'internal scratch']
  %s0 = inlined_call_operand.vmem [shape: f32[20,16], index: 0, kind: input, shape index: {}]
  %s1 = inlined_call_operand.vmem [shape: f32[16,32], index: 1, kind: input, shape index: {}]
  %s2 = inlined_call_operand.vmem [shape: f32[1,32], index: 2, kind: input, shape index: {}]
  %s3 = inlined_call_operand.vmem [shape: f32[32,32], index: 3, kind: input, shape index: {}]
  %s4 = inlined_call_operand.vmem [shape: f32[1,32], index: 4, kind: input, shape index: {}]
  %s5 = inlined_call_operand.hbm [shape: f32[32,128], index: 5, kind: input, shape index: {}]
  %s6 = inlined_call_operand.vmem [shape: f32[1,128], index: 6, kind: input, shape index: {}]
  %s7 = inlined_call_operand.hbm [shape: f32[20,128], index: 7, kind: output, shape index: {}]
  %s8 = sld [smem:[#allocation0]]
  $region65: #{tpu_custom_call.1} parent=0
    _
  %s10 = ssub.s32 1, %s8
  %s11 = scalar_select 0, %s10, %s8
  $region1: #{tpu_custom_call.1} parent=0
    #allocation2 [shape = 'u8[16384]{0}', space=vmem, size = 0x4000, scoped, tag = 'input window, operand 5, single buffered']
    #allocation3 [shape = 's32[2]{0}', space=sflag, size = 0x8, scoped, tag = 'scoped memory for tpu_custom_call.1']
    #allocation4 [shape = 's32[2]{0}', space=sflag, size = 0x8, scoped, tag = 'scoped memory for tpu_custom_call.1']
    #allocation5 [shape = 'u8[8192]{0}', space=vmem, size = 0x2000, scoped, tag = 'output window, operand 0']
    %12 = vsyncpa [#allocation3], 0
    %13 = vsyncpa [#allocation4], 0
    %s14 = scalar_lea.sflag [#allocation4], 1
    %15 = vsyncpa %s14, 0
    loop: start=0, step=1, limit=5
    $region2: #{tpu_custom_call.1} parent=1 // loop_pre_header
      _
    $region3: #{tpu_custom_call.1} parent=1 // loop_header
      %s17 = sphi 0, %s21
      %p18 = scmp.ge.s32.totalorder %s17, 5
      %s27 = sphi 0, %s29
      %s30 = sphi 0, %s27
      %s31 = sphi 0, %s30
      %s47 = sphi 0, %s31
      %s51 = sphi 0, %s51
      %s53 = sphi 0, %s51
      %s54 = sphi 0, %s53
      %s68 = sphi 0, %s54
      %s72 = sphi 0, %s72
      %s74 = sphi 0, %s72
      %s75 = sphi 0, %s74
      %s89 = sphi 0, %s75
      %s93 = sphi 0, %s93
      %s95 = sphi 0, %s93
      %s96 = sphi 0, %s95
      %s110 = sphi 0, %s96
      %s114 = sphi 0, %s114
      %s116 = sphi 0, %s114
      %s117 = sphi 0, %s116
      %s131 = sphi 0, %s117
      %s135 = sphi 0, %s135
      %s137 = sphi 0, %s135
      %s138 = sphi 0, %s137
      %s152 = sphi 0, %s138
      %s156 = sphi 0, %s156
      %s158 = sphi 0, %s156
      %s159 = sphi 0, %s158
      %s173 = sphi 0, %s159
      %s179 = sphi 0, %s181
      %s182 = sphi 0, %s179
      %s183 = sphi 0, %s182
      %s199 = sphi 0, %s183
    $region4: #{tpu_custom_call.1} parent=1 // loop_header_branch
      %20 = sbr.rel (%p18) target = $region8
    $region5: #{tpu_custom_call.1} parent=1 // loop_body
      %s22 = ssub.s32 %s17, 1
      %s23 = ssub.s32 %s17, 2
      %s24 = sadd.s32 %s17, 1
      %s25 = ssub.s32 %s17, %s24
      %p26 = scmp.eq.s32.totalorder %s25, 0
      %s28 = sadd.s32 %s27, 1
      %s29 = scalar_select %p26, %s27, %s28
      %p32 = pneg %p26
      %p33 = scmp.eq.s32.totalorder %s17, 2
      %p34 = por %p32, %p33
      %p35 = scmp.ne.s32.totalorder %s27, %s30
      %p36 = scmp.eq.s32.totalorder %s17, 0
      %p37 = por %p35, %p36
      %p38 = scmp.ne.s32.totalorder %s27, %s30
      %p39 = scmp.eq.s32.totalorder %s22, 2
      %p40 = por %p38, %p39
      %p41 = scmp.ne.s32.totalorder %s30, %s31
      %p42 = scmp.eq.s32.totalorder %s22, 0
      %p43 = por %p41, %p42
      %p44 = scmp.ne.s32.totalorder %s30, %s31
      %p45 = scmp.eq.s32.totalorder %s23, 2
      %p46 = por %p44, %p45
      %p48 = scmp.ne.s32.totalorder %s31, %s47
      %p49 = scmp.eq.s32.totalorder %s23, 0
      %p50 = por %p48, %p49
      %s52 = sadd.s32 %s51, 1
      %p55 = scmp.eq.s32.totalorder %s17, 2
      %p56 = scmp.ne.s32.totalorder %s51, %s53
      %p57 = scmp.eq.s32.totalorder %s17, 0
      %p58 = por %p56, %p57
      %p59 = scmp.ne.s32.totalorder %s51, %s53
      %p60 = scmp.eq.s32.totalorder %s22, 2
      %p61 = por %p59, %p60
      %p62 = scmp.ne.s32.totalorder %s53, %s54
      %p63 = scmp.eq.s32.totalorder %s22, 0
      %p64 = por %p62, %p63
      %p65 = scmp.ne.s32.totalorder %s53, %s54
      %p66 = scmp.eq.s32.totalorder %s23, 2
      %p67 = por %p65, %p66
      %p69 = scmp.ne.s32.totalorder %s54, %s68
      %p70 = scmp.eq.s32.totalorder %s23, 0
      %p71 = por %p69, %p70
      %s73 = sadd.s32 %s72, 1
      %p76 = scmp.eq.s32.totalorder %s17, 2
      %p77 = scmp.ne.s32.totalorder %s72, %s74
      %p78 = scmp.eq.s32.totalorder %s17, 0
      %p79 = por %p77, %p78
      %p80 = scmp.ne.s32.totalorder %s72, %s74
      %p81 = scmp.eq.s32.totalorder %s22, 2
      %p82 = por %p80, %p81
      %p83 = scmp.ne.s32.totalorder %s74, %s75
      %p84 = scmp.eq.s32.totalorder %s22, 0
      %p85 = por %p83, %p84
      %p86 = scmp.ne.s32.totalorder %s74, %s75
      %p87 = scmp.eq.s32.totalorder %s23, 2
      %p88 = por %p86, %p87
      %p90 = scmp.ne.s32.totalorder %s75, %s89
      %p91 = scmp.eq.s32.totalorder %s23, 0
      %p92 = por %p90, %p91
      %s94 = sadd.s32 %s93, 1
      %p97 = scmp.eq.s32.totalorder %s17, 2
      %p98 = scmp.ne.s32.totalorder %s93, %s95
      %p99 = scmp.eq.s32.totalorder %s17, 0
      %p100 = por %p98, %p99
      %p101 = scmp.ne.s32.totalorder %s93, %s95
      %p102 = scmp.eq.s32.totalorder %s22, 2
      %p103 = por %p101, %p102
      %p104 = scmp.ne.s32.totalorder %s95, %s96
      %p105 = scmp.eq.s32.totalorder %s22, 0
      %p106 = por %p104, %p105
      %p107 = scmp.ne.s32.totalorder %s95, %s96
      %p108 = scmp.eq.s32.totalorder %s23, 2
      %p109 = por %p107, %p108
      %p111 = scmp.ne.s32.totalorder %s96, %s110
      %p112 = scmp.eq.s32.totalorder %s23, 0
      %p113 = por %p111, %p112
      %s115 = sadd.s32 %s114, 1
      %p118 = scmp.eq.s32.totalorder %s17, 2
      %p119 = scmp.ne.s32.totalorder %s114, %s116
      %p120 = scmp.eq.s32.totalorder %s17, 0
      %p121 = por %p119, %p120
      %p122 = scmp.ne.s32.totalorder %s114, %s116
      %p123 = scmp.eq.s32.totalorder %s22, 2
      %p124 = por %p122, %p123
      %p125 = scmp.ne.s32.totalorder %s116, %s117
      %p126 = scmp.eq.s32.totalorder %s22, 0
      %p127 = por %p125, %p126
      %p128 = scmp.ne.s32.totalorder %s116, %s117
      %p129 = scmp.eq.s32.totalorder %s23, 2
      %p130 = por %p128, %p129
      %p132 = scmp.ne.s32.totalorder %s117, %s131
      %p133 = scmp.eq.s32.totalorder %s23, 0
      %p134 = por %p132, %p133
      %s136 = sadd.s32 %s135, 1
      %p139 = scmp.eq.s32.totalorder %s17, 2
      %p140 = scmp.ne.s32.totalorder %s135, %s137
      %p141 = scmp.eq.s32.totalorder %s17, 0
      %p142 = por %p140, %p141
      %p143 = scmp.ne.s32.totalorder %s135, %s137
      %p144 = scmp.eq.s32.totalorder %s22, 2
      %p145 = por %p143, %p144
      %p146 = scmp.ne.s32.totalorder %s137, %s138
      %p147 = scmp.eq.s32.totalorder %s22, 0
      %p148 = por %p146, %p147
      %p149 = scmp.ne.s32.totalorder %s137, %s138
      %p150 = scmp.eq.s32.totalorder %s23, 2
      %p151 = por %p149, %p150
      %p153 = scmp.ne.s32.totalorder %s138, %s152
      %p154 = scmp.eq.s32.totalorder %s23, 0
      %p155 = por %p153, %p154
      %s157 = sadd.s32 %s156, 1
      %p160 = scmp.eq.s32.totalorder %s17, 2
      %p161 = scmp.ne.s32.totalorder %s156, %s158
      %p162 = scmp.eq.s32.totalorder %s17, 0
      %p163 = por %p161, %p162
      %p164 = scmp.ne.s32.totalorder %s156, %s158
      %p165 = scmp.eq.s32.totalorder %s22, 2
      %p166 = por %p164, %p165
      %p167 = scmp.ne.s32.totalorder %s158, %s159
      %p168 = scmp.eq.s32.totalorder %s22, 0
      %p169 = por %p167, %p168
      %p170 = scmp.ne.s32.totalorder %s158, %s159
      %p171 = scmp.eq.s32.totalorder %s23, 2
      %p172 = por %p170, %p171
      %p174 = scmp.ne.s32.totalorder %s159, %s173
      %p175 = scmp.eq.s32.totalorder %s23, 0
      %p176 = por %p174, %p175
      %s177 = ssub.s32 %s17, %s24
      %p178 = scmp.eq.s32.totalorder %s177, 0
      %s180 = sadd.s32 %s179, 1
      %s181 = scalar_select %p178, %s179, %s180
      %p184 = pneg %p178
      %p185 = scmp.eq.s32.totalorder %s17, 2
      %p186 = por %p184, %p185
      %p187 = scmp.ne.s32.totalorder %s179, %s182
      %p188 = scmp.eq.s32.totalorder %s17, 0
      %p189 = por %p187, %p188
      %p190 = scmp.ne.s32.totalorder %s179, %s182
      %p191 = scmp.eq.s32.totalorder %s22, 2
      %p192 = por %p190, %p191
      %p193 = scmp.ne.s32.totalorder %s182, %s183
      %p194 = scmp.eq.s32.totalorder %s22, 0
      %p195 = por %p193, %p194
      %p196 = scmp.ne.s32.totalorder %s182, %s183
      %p197 = scmp.eq.s32.totalorder %s23, 2
      %p198 = por %p196, %p197
      %p200 = scmp.ne.s32.totalorder %s183, %s199
      %p201 = scmp.eq.s32.totalorder %s23, 0
      %p202 = por %p200, %p201
      %p203 = scmp.le.s32.totalorder 1, %s17
      %p204 = scmp.lt.s32.totalorder %s17, 4
      %p205 = pnand %p203, %p204
      %p206 = pneg %p205
      // Predicated region
      $region9: #{tpu_custom_call.1} parent=5 // pred_check
        _
      $region10: #{tpu_custom_call.1} parent=5 // pred_check_branch
        %208 = sbr.rel (%p205) target = $region12
      $region11: #{tpu_custom_call.1} parent=5 // pred_region
        %s209 = ssub.s32 %s17, 1
        // Predicated region
        $region13: #{tpu_custom_call.1} parent=11 // pred_check
          %p210 = pneg %p64
        $region14: #{tpu_custom_call.1} parent=11 // pred_check_branch
          %212 = sbr.rel (%p210) target = $region16
        $region15: #{tpu_custom_call.1} parent=11 // pred_region
          _
        $region16: #{tpu_custom_call.1} parent=11 // pred_fallthru
          _
        // Predicated region
        $region17: #{tpu_custom_call.1} parent=11 // pred_check
          %p213 = pneg %p85
        $region18: #{tpu_custom_call.1} parent=11 // pred_check_branch
          %215 = sbr.rel (%p213) target = $region20
        $region19: #{tpu_custom_call.1} parent=11 // pred_region
          _
        $region20: #{tpu_custom_call.1} parent=11 // pred_fallthru
          _
        // Predicated region
        $region21: #{tpu_custom_call.1} parent=11 // pred_check
          %p216 = pneg %p106
        $region22: #{tpu_custom_call.1} parent=11 // pred_check_branch
          %218 = sbr.rel (%p216) target = $region24
        $region23: #{tpu_custom_call.1} parent=11 // pred_region
          _
        $region24: #{tpu_custom_call.1} parent=11 // pred_fallthru
          _
        // Predicated region
        $region25: #{tpu_custom_call.1} parent=11 // pred_check
          %p219 = pneg %p127
        $region26: #{tpu_custom_call.1} parent=11 // pred_check_branch
          %221 = sbr.rel (%p219) target = $region28
        $region27: #{tpu_custom_call.1} parent=11 // pred_region
          _
        $region28: #{tpu_custom_call.1} parent=11 // pred_fallthru
          _
        // Predicated region
        $region29: #{tpu_custom_call.1} parent=11 // pred_check
          %p222 = pneg %p148
        $region30: #{tpu_custom_call.1} parent=11 // pred_check_branch
          %224 = sbr.rel (%p222) target = $region32
        $region31: #{tpu_custom_call.1} parent=11 // pred_region
          %s226 = ssub.s32 512, 512
          %227 = vsyncadd [#allocation3], %s226
          %s228 = sshll.u32 [#allocation2], 4
          %s229 = int_to_ptr.vmem [resolvable:$true] %s228
          %234 = dma.hbm_to_vmem [thread:$0]  %s5, 512, %s229, [#allocation3], 128, 128, 8
        $region32: #{tpu_custom_call.1} parent=11 // pred_fallthru
          _
        // Predicated region
        $region33: #{tpu_custom_call.1} parent=11 // pred_check
          %p235 = pneg %p169
        $region34: #{tpu_custom_call.1} parent=11 // pred_check_branch
          %237 = sbr.rel (%p235) target = $region36
        $region35: #{tpu_custom_call.1} parent=11 // pred_region
          _
        $region36: #{tpu_custom_call.1} parent=11 // pred_fallthru
          _
      $region12: #{tpu_custom_call.1} parent=5 // pred_fallthru
        _
      %p238 = scmp.lt.s32.totalorder %s17, 3
      // Predicated region
      $region37: #{tpu_custom_call.1} parent=5 // pred_check
        %p239 = pneg %p238
      $region38: #{tpu_custom_call.1} parent=5 // pred_check_branch
        %241 = sbr.rel (%p239) target = $region40
      $region39: #{tpu_custom_call.1} parent=5 // pred_region
        // Predicated region
        $region41: #{tpu_custom_call.1} parent=39 // pred_check
          %p242 = pneg %p37
        $region42: #{tpu_custom_call.1} parent=39 // pred_check_branch
          %244 = sbr.rel (%p242) target = $region44
        $region43: #{tpu_custom_call.1} parent=39 // pred_region
          %p245 = scmp.lt.s32.totalorder %s17, 2
          %s246 = scalar_select %p245, %s17, 2
          %s247 = smul.addr %s246, 8
          %s248 = scalar_lea.vmem %s0, %s247
        $region44: #{tpu_custom_call.1} parent=39 // pred_fallthru
          _
      $region40: #{tpu_custom_call.1} parent=5 // pred_fallthru
        _
      %p249 = scmp.le.s32.totalorder 1, %s17
      %p250 = scmp.lt.s32.totalorder %s17, 4
      %p251 = pnand %p249, %p250
      %p252 = pneg %p251
      // Predicated region
      $region45: #{tpu_custom_call.1} parent=5 // pred_check
        _
      $region46: #{tpu_custom_call.1} parent=5 // pred_check_branch
        %254 = sbr.rel (%p251) target = $region48
      $region47: #{tpu_custom_call.1} parent=5 // pred_region
        %s255 = ssub.s32 %s17, 1
        // Predicated region
        $region49: #{tpu_custom_call.1} parent=47 // pred_check
          %p256 = pneg %p148
        $region50: #{tpu_custom_call.1} parent=47 // pred_check_branch
          %258 = sbr.rel (%p256) target = $region52
        $region51: #{tpu_custom_call.1} parent=47 // pred_region
          %259 = dma.done [#allocation3], 512
        $region52: #{tpu_custom_call.1} parent=47 // pred_fallthru
          _
        %p260 = scmp.lt.s32.totalorder %s22, 2
        %s261 = scalar_select %p260, %s22, 2
        %s262 = smul.addr %s261, 8
        %s263 = scalar_lea.vmem %s0, %s262
        %p264 = pneg %p43
        %p265 = pneg %p40
        %p266 = pneg %p64
        %p267 = pneg %p61
        %p268 = pneg %p85
        %p269 = pneg %p82
        %p270 = pneg %p106
        %p271 = pneg %p103
        %p272 = pneg %p127
        %p273 = pneg %p124
        %p274 = pneg %p148
        %p275 = pneg %p145
        %p276 = pneg %p169
        %p277 = pneg %p166
        %p278 = pneg %p195
        %p279 = pneg %p192
        %s280 = sand.u32 %s182, 1
        %s281 = scalar_lea.sflag [#allocation4], %s280
        %s282 = sand.u32 %s182, 1
        %s283 = smul.addr %s282, 8
        %s284 = scalar_lea.vmem [#allocation5], %s283
        %p285 = scmp.lt.s32.totalorder %s22, 2
        %s286 = scalar_select %p285, %s22, 2
        %s287 = smul.addr %s286, 8
        %s288 = scalar_lea.vmem %s0, %s287
        %v289 = vld [vmem:[%s288] sm:$0xff]
        %v290 = vld [vmem:[%s1] sm:$0xff]
        %v291 = vld [vmem:[%s1 + $0x8] sm:$0xff]
        %v292 = vld [vmem:[%s2] sm:$0x1]
        %v294 = vlaneseq
        %v295 = vshrl.u32 %v294, 7
        %v296 = vsub.s32 0, %v295
        %v297 = vrot.slane %v292, %v296
        %vm299 = vcmask 130048
        %v301 = vsel %vm299, %v289, 0
        %303 = vmatprep.subr.mxu0 0.0
        %304 = vmatpush1.msra.mxu0 %v290
        %305 = vmatprep.subr.mxu0 0.0
        %306 = vmatpush1.msra.mxu0 %v291
        %307 = vmatprep.subr.mxu0 0.0
        %308 = vmatpush1.msra.mxu0 0.0
        %309 = vmatprep.subr.mxu0 0.0
        %310 = vmatpush1.msra.mxu0 0.0
        %311 = vmatprep.subr.mxu0 0.0
        %312 = vmatpush1.msra.mxu0 0.0
        %313 = vmatprep.subr.mxu0 0.0
        %314 = vmatpush1.msra.mxu0 0.0
        %315 = vmatprep.subr.mxu0 0.0
        %316 = vmatpush1.msra.mxu0 0.0
        %317 = vmatprep.subr.mxu0 0.0
        %318 = vmatpush1.msra.mxu0 0.0
        %319 = vmatprep.subr.mxu0 0.0
        %320 = vmatpush1.msra.mxu0 0.0
        %321 = vmatprep.subr.mxu0 0.0
        %322 = vmatpush1.msra.mxu0 0.0
        %323 = vmatprep.subr.mxu0 0.0
        %324 = vmatpush1.msra.mxu0 0.0
        %325 = vmatprep.subr.mxu0 0.0
        %326 = vmatpush1.msra.mxu0 0.0
        %327 = vmatprep.subr.mxu0 0.0
        %328 = vmatpush1.msra.mxu0 0.0
        %329 = vmatprep.subr.mxu0 0.0
        %330 = vmatpush1.msra.mxu0 0.0
        %331 = vmatprep.subr.mxu0 0.0
        %332 = vmatpush1.msra.mxu0 0.0
        %333 = vmatprep.subr.mxu0 0.0
        %334 = vmatpush1.msra.mxu0 0.0
        %335 = vmatprep.subr.mxu0 0.0
        %336 = vmatpush1.msra.mxu0 0.0
        %337 = vmatprep.subr.mxu0 0.0
        %338 = vmatpush1.msra.mxu0 0.0
        %339 = vmatprep.subr.mxu0 0.0
        %340 = vmatpush1.msra.mxu0 0.0
        %341 = vmatprep.subr.mxu0 0.0
        %342 = vmatpush1.msra.mxu0 0.0
        %343 = vmatprep.subr.mxu0 0.0
        %344 = vmatpush1.msra.mxu0 0.0
        %345 = vmatprep.subr.mxu0 0.0
        %346 = vmatpush1.msra.mxu0 0.0
        %347 = vmatprep.subr.mxu0 0.0
        %348 = vmatpush1.msra.mxu0 0.0
        %349 = vmatprep.subr.mxu0 0.0
        %350 = vmatpush1.msra.mxu0 0.0
        %351 = vmatprep.subr.mxu0 0.0
        %352 = vmatpush1.msra.mxu0 0.0
        %353 = vmatprep.subr.mxu0 0.0
        %354 = vmatpush1.msra.mxu0 0.0
        %355 = vmatprep.subr.mxu0 0.0
        %356 = vmatpush1.msra.mxu0 0.0
        %357 = vmatprep.subr.mxu0 0.0
        %358 = vmatpush1.msra.mxu0 0.0
        %359 = vmatprep.subr.mxu0 0.0
        %360 = vmatpush1.msra.mxu0 0.0
        %361 = vmatprep.subr.mxu0 0.0
        %362 = vmatpush1.msra.mxu0 0.0
        %363 = vmatprep.subr.mxu0 0.0
        %364 = vmatpush1.msra.mxu0 0.0
        %365 = vmatprep.subr.mxu0 0.0
        %366 = vmatpush1.msra.mxu0 0.0
        %367 = vmatprep.mubr.f32.mxu0 0.0
        %368 = vmatmul.mubr.f32.gmra.mrb[0].mxu0 %v301
        %v369 = vpop.f32.mrb[0].mxu0
        %v370 = vadd.f32 %v297, %v369
        %v371 = vpop.f32.mrb[0].mxu0
        %372 = vdwg.mxu0
        %v373 = vmax.f32 %v370, 0.0
        %v374 = vld [vmem:[%s3] sm:$0xff]
        %v375 = vld [vmem:[%s3 + $0x8] sm:$0xff]
        %v376 = vld [vmem:[%s3 + $0x10] sm:$0xff]
        %v377 = vld [vmem:[%s3 + $0x18] sm:$0xff]
        %v378 = vld [vmem:[%s4] sm:$0x1]
        %v380 = vlaneseq
        %v381 = vshrl.u32 %v380, 7
        %v382 = vsub.s32 0, %v381
        %v383 = vrot.slane %v378, %v382
        %vm385 = vcmask 261120
        %v387 = vsel %vm385, %v373, 0
        %389 = vmatprep.subr.mxu0 0.0
        %390 = vmatpush1.msra.mxu0 %v374
        %391 = vmatprep.subr.mxu0 0.0
        %392 = vmatpush1.msra.mxu0 %v375
        %393 = vmatprep.subr.mxu0 0.0
        %394 = vmatpush1.msra.mxu0 %v376
        %395 = vmatprep.subr.mxu0 0.0
        %396 = vmatpush1.msra.mxu0 %v377
        %397 = vmatprep.subr.mxu0 0.0
        %398 = vmatpush1.msra.mxu0 0.0
        %399 = vmatprep.subr.mxu0 0.0
        %400 = vmatpush1.msra.mxu0 0.0
        %401 = vmatprep.subr.mxu0 0.0
        %402 = vmatpush1.msra.mxu0 0.0
        %403 = vmatprep.subr.mxu0 0.0
        %404 = vmatpush1.msra.mxu0 0.0
        %405 = vmatprep.subr.mxu0 0.0
        %406 = vmatpush1.msra.mxu0 0.0
        %407 = vmatprep.subr.mxu0 0.0
        %408 = vmatpush1.msra.mxu0 0.0
        %409 = vmatprep.subr.mxu0 0.0
        %410 = vmatpush1.msra.mxu0 0.0
        %411 = vmatprep.subr.mxu0 0.0
        %412 = vmatpush1.msra.mxu0 0.0
        %413 = vmatprep.subr.mxu0 0.0
        %414 = vmatpush1.msra.mxu0 0.0
        %415 = vmatprep.subr.mxu0 0.0
        %416 = vmatpush1.msra.mxu0 0.0
        %417 = vmatprep.subr.mxu0 0.0
        %418 = vmatpush1.msra.mxu0 0.0
        %419 = vmatprep.subr.mxu0 0.0
        %420 = vmatpush1.msra.mxu0 0.0
        %421 = vmatprep.subr.mxu0 0.0
        %422 = vmatpush1.msra.mxu0 0.0
        %423 = vmatprep.subr.mxu0 0.0
        %424 = vmatpush1.msra.mxu0 0.0
        %425 = vmatprep.subr.mxu0 0.0
        %426 = vmatpush1.msra.mxu0 0.0
        %427 = vmatprep.subr.mxu0 0.0
        %428 = vmatpush1.msra.mxu0 0.0
        %429 = vmatprep.subr.mxu0 0.0
        %430 = vmatpush1.msra.mxu0 0.0
        %431 = vmatprep.subr.mxu0 0.0
        %432 = vmatpush1.msra.mxu0 0.0
        %433 = vmatprep.subr.mxu0 0.0
        %434 = vmatpush1.msra.mxu0 0.0
        %435 = vmatprep.subr.mxu0 0.0
        %436 = vmatpush1.msra.mxu0 0.0
        %437 = vmatprep.subr.mxu0 0.0
        %438 = vmatpush1.msra.mxu0 0.0
        %439 = vmatprep.subr.mxu0 0.0
        %440 = vmatpush1.msra.mxu0 0.0
        %441 = vmatprep.subr.mxu0 0.0
        %442 = vmatpush1.msra.mxu0 0.0
        %443 = vmatprep.subr.mxu0 0.0
        %444 = vmatpush1.msra.mxu0 0.0
        %445 = vmatprep.subr.mxu0 0.0
        %446 = vmatpush1.msra.mxu0 0.0
        %447 = vmatprep.subr.mxu0 0.0
        %448 = vmatpush1.msra.mxu0 0.0
        %449 = vmatprep.subr.mxu0 0.0
        %450 = vmatpush1.msra.mxu0 0.0
        %451 = vmatprep.subr.mxu0 0.0
        %452 = vmatpush1.msra.mxu0 0.0
        %453 = vmatprep.mubr.f32.mxu0 0.0
        %454 = vmatmul.mubr.f32.gmra.mrb[0].mxu0 %v387
        %v455 = vpop.f32.mrb[0].mxu0
        %v456 = vadd.f32 %v383, %v455
        %v457 = vpop.f32.mrb[0].mxu0
        %458 = vdwg.mxu0
        %v459 = vmax.f32 %v456, 0.0
        %v460 = vld [vmem:[#allocation2] sm:$0xff]
        %v461 = vld [vmem:[#allocation2 + $0x8] sm:$0xff]
        %v462 = vld [vmem:[#allocation2 + $0x10] sm:$0xff]
        %v463 = vld [vmem:[#allocation2 + $0x18] sm:$0xff]
        %v464 = vld [vmem:[%s6] sm:$0x1]
        %v466 = vlaneseq
        %v467 = vshrl.u32 %v466, 7
        %v468 = vsub.s32 0, %v467
        %v469 = vrot.slane %v464, %v468
        %v472 = vsel %vm385, %v459, 0
        %474 = vmatprep.subr.mxu0 0.0
        %475 = vmatpush1.msra.mxu0 %v460
        %476 = vmatprep.subr.mxu0 0.0
        %477 = vmatpush1.msra.mxu0 %v461
        %478 = vmatprep.subr.mxu0 0.0
        %479 = vmatpush1.msra.mxu0 %v462
        %480 = vmatprep.subr.mxu0 0.0
        %481 = vmatpush1.msra.mxu0 %v463
        %482 = vmatprep.subr.mxu0 0.0
        %483 = vmatpush1.msra.mxu0 0.0
        %484 = vmatprep.subr.mxu0 0.0
        %485 = vmatpush1.msra.mxu0 0.0
        %486 = vmatprep.subr.mxu0 0.0
        %487 = vmatpush1.msra.mxu0 0.0
        %488 = vmatprep.subr.mxu0 0.0
        %489 = vmatpush1.msra.mxu0 0.0
        %490 = vmatprep.subr.mxu0 0.0
        %491 = vmatpush1.msra.mxu0 0.0
        %492 = vmatprep.subr.mxu0 0.0
        %493 = vmatpush1.msra.mxu0 0.0
        %494 = vmatprep.subr.mxu0 0.0
        %495 = vmatpush1.msra.mxu0 0.0
        %496 = vmatprep.subr.mxu0 0.0
        %497 = vmatpush1.msra.mxu0 0.0
        %498 = vmatprep.subr.mxu0 0.0
        %499 = vmatpush1.msra.mxu0 0.0
        %500 = vmatprep.subr.mxu0 0.0
        %501 = vmatpush1.msra.mxu0 0.0
        %502 = vmatprep.subr.mxu0 0.0
        %503 = vmatpush1.msra.mxu0 0.0
        %504 = vmatprep.subr.mxu0 0.0
        %505 = vmatpush1.msra.mxu0 0.0
        %506 = vmatprep.subr.mxu0 0.0
        %507 = vmatpush1.msra.mxu0 0.0
        %508 = vmatprep.subr.mxu0 0.0
        %509 = vmatpush1.msra.mxu0 0.0
        %510 = vmatprep.subr.mxu0 0.0
        %511 = vmatpush1.msra.mxu0 0.0
        %512 = vmatprep.subr.mxu0 0.0
        %513 = vmatpush1.msra.mxu0 0.0
        %514 = vmatprep.subr.mxu0 0.0
        %515 = vmatpush1.msra.mxu0 0.0
        %516 = vmatprep.subr.mxu0 0.0
        %517 = vmatpush1.msra.mxu0 0.0
        %518 = vmatprep.subr.mxu0 0.0
        %519 = vmatpush1.msra.mxu0 0.0
        %520 = vmatprep.subr.mxu0 0.0
        %521 = vmatpush1.msra.mxu0 0.0
        %522 = vmatprep.subr.mxu0 0.0
        %523 = vmatpush1.msra.mxu0 0.0
        %524 = vmatprep.subr.mxu0 0.0
        %525 = vmatpush1.msra.mxu0 0.0
        %526 = vmatprep.subr.mxu0 0.0
        %527 = vmatpush1.msra.mxu0 0.0
        %528 = vmatprep.subr.mxu0 0.0
        %529 = vmatpush1.msra.mxu0 0.0
        %530 = vmatprep.subr.mxu0 0.0
        %531 = vmatpush1.msra.mxu0 0.0
        %532 = vmatprep.subr.mxu0 0.0
        %533 = vmatpush1.msra.mxu0 0.0
        %534 = vmatprep.subr.mxu0 0.0
        %535 = vmatpush1.msra.mxu0 0.0
        %536 = vmatprep.subr.mxu0 0.0
        %537 = vmatpush1.msra.mxu0 0.0
        %538 = vmatprep.mubr.f32.mxu0 0.0
        %539 = vmatmul.mubr.f32.gmra.mrb[0].mxu0 %v472
        %v540 = vpop.f32.mrb[0].mxu0
        %v541 = vadd.f32 %v469, %v540
        %v542 = vpop.f32.mrb[0].mxu0
        %543 = vdwg.mxu0
        %v544 = vlaneseq
        %v545 = vand.u32 %v544, 127
        %v546 = vmax.f32 %v541, -20.0
        %v547 = vmin.f32 %v546, 2.0
        %v548 = vmul.f32 %v547, 1.442695
        %v549 = vpow.pop %v548
        %vm550 = vcmp.ge.s32.totalorder %v545, 8
        %v551 = vsel %vm550, %v549, %v541
        %552 = vst [vmem:[%s284] sm:$0xff] %v551
        %s553 = sand.u32 %s182, 1
        %s554 = scalar_lea.sflag [#allocation4], %s553
        %s555 = sand.u32 %s182, 1
        %s556 = smul.addr %s555, 8
        %s557 = scalar_lea.vmem [#allocation5], %s556
        // Predicated region
        $region53: #{tpu_custom_call.1} parent=47 // pred_check
          %p558 = pneg %p192
        $region54: #{tpu_custom_call.1} parent=47 // pred_check_branch
          %560 = sbr.rel (%p558) target = $region56
        $region55: #{tpu_custom_call.1} parent=47 // pred_region
          %s562 = ssub.s32 128, 128
          %563 = vsyncadd %s554, %s562
          %s564 = smul.addr %s22, 128
          %s565 = scalar_lea.hbm %s7, %s564
          %s567 = sshll.u32 %s557, 4
          %s568 = int_to_ptr.vmem [resolvable:$true] %s567
          %570 = dma.vmem_to_hbm [thread:$0]  %s568, 128, %s565, %s554
        $region56: #{tpu_custom_call.1} parent=47 // pred_fallthru
          _
      $region48: #{tpu_custom_call.1} parent=5 // pred_fallthru
        _
      %p571 = scmp.le.s32.totalorder 2, %s17
      // Predicated region
      $region57: #{tpu_custom_call.1} parent=5 // pred_check
        %p572 = pneg %p571
      $region58: #{tpu_custom_call.1} parent=5 // pred_check_branch
        %574 = sbr.rel (%p572) target = $region60
      $region59: #{tpu_custom_call.1} parent=5 // pred_region
        %s575 = ssub.s32 %s17, 2
        // Predicated region
        $region61: #{tpu_custom_call.1} parent=59 // pred_check
          %p576 = pneg %p198
        $region62: #{tpu_custom_call.1} parent=59 // pred_check_branch
          %578 = sbr.rel (%p576) target = $region64
        $region63: #{tpu_custom_call.1} parent=59 // pred_region
          %s579 = sand.u32 %s183, 1
          %s580 = scalar_lea.sflag [#allocation4], %s579
          %s581 = sand.u32 %s183, 1
          %s582 = smul.addr %s581, 8
          %s583 = scalar_lea.vmem [#allocation5], %s582
          %584 = dma.done %s580, 128
        $region64: #{tpu_custom_call.1} parent=59 // pred_fallthru
          _
      $region60: #{tpu_custom_call.1} parent=5 // pred_fallthru
        _
    $region6: #{tpu_custom_call.1} parent=1 // loop_footer
      %s21 = sadd.s32 1, %s17
    $region7: #{tpu_custom_call.1} parent=1 // loop_footer_branch
      %16 = sbr.rel target = $region3
    $region8: #{tpu_custom_call.1} parent=1 // loop_exit
      _
    %585 = vsyncpa [#allocation3], 1
    %s586 = scalar_lea.sflag [#allocation3], 1
    %587 = vsyncpa %s586, 1
    %588 = vsyncpa [#allocation4], 1
    %s589 = scalar_lea.sflag [#allocation4], 1
    %590 = vsyncpa %s589, 1

</llo_original>
